<compile_context>
chip_gen: v5e
topology: v5e:2x2
jax: 0.10.0
libtpu: 0.0.40
codegen_flags: <defaults>
</compile_context>

<pallas_src>
import jax
import jax.numpy as jnp
from jax import lax
from jax.experimental import pallas as pl
from jax.experimental.pallas import tpu as pltpu


def _vmem_limit_bytes():
    """Per-generation scoped-VMEM limit (v5e/v6e: ~96 MiB, v7x: ~48 MiB)."""
    try:
        cap = int(pltpu.get_tpu_info().vmem_capacity_bytes)
        return min((cap * 3) // 4, 100 * 1024 * 1024)
    except Exception:
        return 48 * 1024 * 1024


# ---------------------------------------------------------------------------
# Fused kernel: conv1+BN1+ReLU (x3 depth taps) -> conv2(3x3x3)+BN2+ReLU ->
#               conv3(1x1x1)+BN3 + residual + ReLU, one (n, d) slice per step.
# ---------------------------------------------------------------------------
def _bottleneck_kernel(zm_ref, z0_ref, zp_ref,
                       w1_ref, s1_ref, b1_ref,
                       w2_ref, s2_ref, b2_ref,
                       w3_ref, s3_ref, b3_ref,
                       o_ref, slab_ref):
    h, w, cin = z0_ref.shape
    hp2, wp2, p3 = slab_ref.shape          # (h+2, w+2, 3*planes)
    p = p3 // 3
    c4 = o_ref.shape[-1]
    m0 = h * w

    di = pl.program_id(1)
    nd = pl.num_programs(1)

    w1 = w1_ref[...]                        # (cin, p) bf16
    s1 = s1_ref[...]                        # (1, p) f32
    b1 = b1_ref[...]

    def conv1_act(z_ref):
        xk = z_ref[...].reshape(m0, cin)    # bf16 row tile
        a = jnp.dot(xk, w1, preferred_element_type=jnp.float32)
        return jnp.maximum(a * s1 + b1, 0.0)

    # Depth-boundary masks: padded activation (post BN1+ReLU) must be zero.
    a_m = conv1_act(zm_ref) * jnp.where(di > 0, 1.0, 0.0)
    a_0 = conv1_act(z0_ref)
    a_p = conv1_act(zp_ref) * jnp.where(di < nd - 1, 1.0, 0.0)

    # Pack the three depth taps along channels -> K = 3*planes for conv2.
    a_cat = jnp.concatenate([a_m, a_0, a_p], axis=-1)        # (m0, 3p) f32

    # Build the H/W-haloed slab in VMEM (zero the halo frame every step; the
    # interior is fully rewritten every step, so no cross-step scratch state).
    zero_row = jnp.zeros((1, wp2, p3), jnp.float32)
    zero_col = jnp.zeros((h, 1, p3), jnp.float32)
    slab_ref[0:1, :, :] = zero_row
    slab_ref[h + 1:h + 2, :, :] = zero_row
    slab_ref[1:h + 1, 0:1, :] = zero_col
    slab_ref[1:h + 1, w + 1:w + 2, :] = zero_col
    slab_ref[1:h + 1, 1:w + 1, :] = a_cat.reshape(h, w, p3)

    zcat = slab_ref[...].astype(jnp.bfloat16)                # (hp2, wp2, 3p)

    # conv2: 9 shifted matmuls with K = 3p, f32 accumulation on the MXU.
    acc2 = jnp.zeros((m0, p), jnp.float32)
    for kh in range(3):
        for kw in range(3):
            patch = zcat[kh:kh + h, kw:kw + w, :].reshape(m0, p3)
            acc2 = acc2 + jnp.dot(patch, w2_ref[kh, kw],
                                  preferred_element_type=jnp.float32)

    # BN2 + ReLU, conv3 (1x1x1), BN3 + residual + ReLU fused into the store.
    y2 = jnp.maximum(acc2 * s2_ref[...] + b2_ref[...], 0.0)
    acc3 = jnp.dot(y2.astype(jnp.bfloat16), w3_ref[...],
                   preferred_element_type=jnp.float32)
    res = z0_ref[...].reshape(m0, c4).astype(jnp.float32)    # identity residual
    y = jnp.maximum(acc3 * s3_ref[...] + b3_ref[...] + res, 0.0)
    o_ref[...] = y.reshape(h, w, c4).astype(o_ref.dtype)


def _bottleneck_pallas(x_ndhwc_bf16, params):
    """x: (N, D, H, W, Cin) bf16 -> (N, D, H, W, C4) bf16."""
    n, d, h, w, cin = x_ndhwc_bf16.shape
    w1 = params["w1"]                       # (cin, p)   bf16
    w2p = params["w2p"]                     # (3,3,3p,p) bf16
    w3 = params["w3"]                       # (p, c4)    bf16
    p = w1.shape[1]
    c4 = w3.shape[1]

    s1 = params["s1"].reshape(1, p).astype(jnp.float32)
    b1 = params["b1"].reshape(1, p).astype(jnp.float32)
    s2 = params["s2"].reshape(1, p).astype(jnp.float32)
    b2 = params["b2"].reshape(1, p).astype(jnp.float32)
    s3 = params["s3"].reshape(1, c4).astype(jnp.float32)
    b3 = params["b3"].reshape(1, c4).astype(jnp.float32)

    x_block = (None, None, h, w, cin)

    grid_spec = pltpu.PrefetchScalarGridSpec(
        num_scalar_prefetch=0,
        grid=(n, d),
        in_specs=[
            # x depth slices d-1 / d / d+1 (clamped; zero-masked in-kernel)
            pl.BlockSpec(x_block, lambda ni, di: (ni, jnp.maximum(di - 1, 0), 0, 0, 0)),
            pl.BlockSpec(x_block, lambda ni, di: (ni, di, 0, 0, 0)),
            pl.BlockSpec(x_block, lambda ni, di: (ni, jnp.minimum(di + 1, d - 1), 0, 0, 0)),
            pl.BlockSpec((cin, p), lambda ni, di: (0, 0)),             # w1
            pl.BlockSpec((1, p), lambda ni, di: (0, 0)),               # s1
            pl.BlockSpec((1, p), lambda ni, di: (0, 0)),               # b1
            pl.BlockSpec((3, 3, 3 * p, p), lambda ni, di: (0, 0, 0, 0)),  # w2 packed
            pl.BlockSpec((1, p), lambda ni, di: (0, 0)),               # s2
            pl.BlockSpec((1, p), lambda ni, di: (0, 0)),               # b2
            pl.BlockSpec((p, c4), lambda ni, di: (0, 0)),              # w3
            pl.BlockSpec((1, c4), lambda ni, di: (0, 0)),              # s3
            pl.BlockSpec((1, c4), lambda ni, di: (0, 0)),              # b3
        ],
        out_specs=pl.BlockSpec((None, None, h, w, c4),
                               lambda ni, di: (ni, di, 0, 0, 0)),
        scratch_shapes=[pltpu.VMEM((h + 2, w + 2, 3 * p), jnp.float32)],
    )
    return pl.pallas_call(
        _bottleneck_kernel,
        out_shape=jax.ShapeDtypeStruct((n, d, h, w, c4), jnp.bfloat16),
        grid_spec=grid_spec,
        compiler_params=pltpu.CompilerParams(
            dimension_semantics=("parallel", "parallel"),
            vmem_limit_bytes=_vmem_limit_bytes()),
    )(x_ndhwc_bf16, x_ndhwc_bf16, x_ndhwc_bf16,
      w1, s1, b1, w2p, s2, b2, w3, s3, b3)


# ---------------------------------------------------------------------------
# Bottleneck forward (wrapper) -- NCDHW in/out, like the PyTorch module.
# ---------------------------------------------------------------------------
def fold_bn(gamma, beta, mean, var, eps=1e-5):
    scale = gamma / jnp.sqrt(var + eps)
    bias = beta - mean * scale
    return scale, bias


@jax.jit
def bottleneck_forward(x_ncdhw, params):
    """stride=1, downsample=None  =>  requires in_planes == planes * 4."""
    n, cin, d, h, w = x_ncdhw.shape
    c4 = params["w3"].shape[1]
    assert cin == c4, "identity residual requires in_planes == planes * 4"
    # TODO(synk): accept/emit NDHWC at the API boundary to drop even these two
    # fused transpose+cast passes (kept to preserve the NCDHW contract).
    x_ndhwc = jnp.transpose(x_ncdhw, (0, 2, 3, 4, 1)).astype(jnp.bfloat16)
    out = _bottleneck_pallas(x_ndhwc, params)                # bf16 NDHWC
    return jnp.transpose(out, (0, 4, 1, 2, 3)).astype(jnp.float32)


# ---------------------------------------------------------------------------
# Pure-JAX f32 reference (lax.conv_general_dilated) for verification
# ---------------------------------------------------------------------------
def reference_forward(x, p):
    dn = ("NCDHW", "OIDHW", "NCDHW")

    def bn(y, s, b):
        return y * s.reshape(1, -1, 1, 1, 1) + b.reshape(1, -1, 1, 1, 1)

    out = lax.conv_general_dilated(x, p["cw1"], (1, 1, 1), "VALID",
                                   dimension_numbers=dn,
                                   precision=lax.Precision.HIGHEST)
    out = jnp.maximum(bn(out, p["s1"], p["b1"]), 0.0)
    out = lax.conv_general_dilated(out, p["cw2"], (1, 1, 1),
                                   [(1, 1), (1, 1), (1, 1)],
                                   dimension_numbers=dn,
                                   precision=lax.Precision.HIGHEST)
    out = jnp.maximum(bn(out, p["s2"], p["b2"]), 0.0)
    out = lax.conv_general_dilated(out, p["cw3"], (1, 1, 1), "VALID",
                                   dimension_numbers=dn,
                                   precision=lax.Precision.HIGHEST)
    out = bn(out, p["s3"], p["b3"]) + x
    return jnp.maximum(out, 0.0)


# ---------------------------------------------------------------------------
if __name__ == "__main__":
    key = jax.random.PRNGKey(0)
    planes = 4
    in_planes = planes * 4          # = 16 -> identity residual is valid
    out_planes = planes * 4
    N, D, H, W = 2, 4, 8, 8

    ks = jax.random.split(key, 8)
    x = jax.random.normal(ks[0], (N, in_planes, D, H, W), jnp.float32)

    # PyTorch-shaped conv weights (OIDHW), no bias.
    cw1 = jax.random.normal(ks[1], (planes, in_planes, 1, 1, 1), jnp.float32) * 0.1
    cw2 = jax.random.normal(ks[2], (planes, planes, 3, 3, 3), jnp.float32) * 0.1
    cw3 = jax.random.normal(ks[3], (out_planes, planes, 1, 1, 1), jnp.float32) * 0.1

    def bn_params(k, c):
        k1, k2, k3, k4 = jax.random.split(k, 4)
        gamma = 1.0 + 0.1 * jax.random.normal(k1, (c,), jnp.float32)
        beta = 0.1 * jax.random.normal(k2, (c,), jnp.float32)
        mean = 0.1 * jax.random.normal(k3, (c,), jnp.float32)
        var = jnp.abs(jax.random.normal(k4, (c,), jnp.float32)) + 0.5
        return fold_bn(gamma, beta, mean, var)

    s1, b1 = bn_params(ks[4], planes)
    s2, b2 = bn_params(ks[5], planes)
    s3, b3 = bn_params(ks[6], out_planes)

    params = {
        # matmul-layout bf16 weights for the fused Pallas kernel
        "w1": cw1.reshape(planes, in_planes).T.astype(jnp.bfloat16),          # (Cin, P)
        # (O,I,KD,KH,KW) -> (KH,KW,KD,I,O) -> (3,3,3P,P): packed K = kd*P + i
        "w2p": cw2.transpose(3, 4, 2, 1, 0).reshape(3, 3, 3 * planes, planes)
                  .astype(jnp.bfloat16),
        "w3": cw3.reshape(out_planes, planes).T.astype(jnp.bfloat16),         # (P, 4P)
        "s1": s1, "b1": b1, "s2": s2, "b2": b2, "s3": s3, "b3": b3,
        # original f32 conv weights for the reference
        "cw1": cw1, "cw2": cw2, "cw3": cw3,
    }

    out = jax.block_until_ready(bottleneck_forward(x, params))
    ref = jax.block_until_ready(reference_forward(x, params))

    assert out.shape == (N, out_planes, D, H, W), out.shape
    # bf16 MXU operands / bf16 residual & output (f32 accumulation) =>
    # looser tolerance than a pure-f32 run.
    assert jnp.allclose(out, ref, atol=5e-2, rtol=5e-2), (
        float(jnp.max(jnp.abs(out - ref))))

    print("KERNEL_OK")
</pallas_src>

<mosaic_0001>
module attributes {stable_mosaic.version = 11 : i64} {
  func.func @_bottleneck_kernel(%arg0: i32, %arg1: i32, %arg2: memref<1x1x8x8x16xbf16, #tpu.memory_space<vmem>>, %arg3: memref<1x1x8x8x16xbf16, #tpu.memory_space<vmem>>, %arg4: memref<1x1x8x8x16xbf16, #tpu.memory_space<vmem>>, %arg5: memref<16x4xbf16, #tpu.memory_space<vmem>>, %arg6: memref<1x4xf32, #tpu.memory_space<vmem>>, %arg7: memref<1x4xf32, #tpu.memory_space<vmem>>, %arg8: memref<3x3x12x4xbf16, #tpu.memory_space<vmem>>, %arg9: memref<1x4xf32, #tpu.memory_space<vmem>>, %arg10: memref<1x4xf32, #tpu.memory_space<vmem>>, %arg11: memref<4x16xbf16, #tpu.memory_space<vmem>>, %arg12: memref<1x16xf32, #tpu.memory_space<vmem>>, %arg13: memref<1x16xf32, #tpu.memory_space<vmem>>, %arg14: memref<1x1x8x8x16xbf16, #tpu.memory_space<vmem>>, %arg15: memref<10x10x12xf32, #tpu.memory_space<vmem>>) attributes {dimension_semantics = [#tpu.dimension_semantics<parallel>, #tpu.dimension_semantics<parallel>], iteration_bounds = array<i64: 2, 4>, scalar_prefetch = 0 : i64, scratch_operands = 1 : i64, tpu.core_type = #tpu.core_type<tc>, window_params = [{transform_indices = @transform_0, window_bounds = array<i64: 1, 1, 8, 8, 16>}, {transform_indices = @transform_1, window_bounds = array<i64: 1, 1, 8, 8, 16>}, {transform_indices = @transform_2, window_bounds = array<i64: 1, 1, 8, 8, 16>}, {pipeline_mode = #tpu.pipeline_mode<synchronous>, transform_indices = @transform_3, window_bounds = array<i64: 16, 4>}, {pipeline_mode = #tpu.pipeline_mode<synchronous>, transform_indices = @transform_4, window_bounds = array<i64: 1, 4>}, {pipeline_mode = #tpu.pipeline_mode<synchronous>, transform_indices = @transform_5, window_bounds = array<i64: 1, 4>}, {pipeline_mode = #tpu.pipeline_mode<synchronous>, transform_indices = @transform_6, window_bounds = array<i64: 3, 3, 12, 4>}, {pipeline_mode = #tpu.pipeline_mode<synchronous>, transform_indices = @transform_7, window_bounds = array<i64: 1, 4>}, {pipeline_mode = #tpu.pipeline_mode<synchronous>, transform_indices = @transform_8, window_bounds = array<i64: 1, 4>}, {pipeline_mode = #tpu.pipeline_mode<synchronous>, transform_indices = @transform_9, window_bounds = array<i64: 4, 16>}, {pipeline_mode = #tpu.pipeline_mode<synchronous>, transform_indices = @transform_10, window_bounds = array<i64: 1, 16>}, {pipeline_mode = #tpu.pipeline_mode<synchronous>, transform_indices = @transform_11, window_bounds = array<i64: 1, 16>}, {transform_indices = @transform_12, window_bounds = array<i64: 1, 1, 8, 8, 16>}]} {
    %c0 = arith.constant 0 : index
    %c0_0 = arith.constant 0 : index
    %0 = vector.load %arg5[%c0, %c0_0] : memref<16x4xbf16, #tpu.memory_space<vmem>>, vector<16x4xbf16>
    %c0_1 = arith.constant 0 : index
    %c0_2 = arith.constant 0 : index
    %1 = vector.load %arg6[%c0_1, %c0_2] : memref<1x4xf32, #tpu.memory_space<vmem>>, vector<1x4xf32>
    %c0_3 = arith.constant 0 : index
    %c0_4 = arith.constant 0 : index
    %2 = vector.load %arg7[%c0_3, %c0_4] : memref<1x4xf32, #tpu.memory_space<vmem>>, vector<1x4xf32>
    %c0_5 = arith.constant 0 : index
    %c0_6 = arith.constant 0 : index
    %c0_7 = arith.constant 0 : index
    %c0_8 = arith.constant 0 : index
    %c0_9 = arith.constant 0 : index
    %3 = vector.load %arg2[%c0_5, %c0_6, %c0_7, %c0_8, %c0_9] : memref<1x1x8x8x16xbf16, #tpu.memory_space<vmem>>, vector<1x1x8x8x16xbf16>
    %4 = vector.shape_cast %3 : vector<1x1x8x8x16xbf16> to vector<8x8x16xbf16>
    %5 = vector.shape_cast %4 : vector<8x8x16xbf16> to vector<64x16xbf16>
    %cst = arith.constant dense<0.000000e+00> : vector<64x4xf32>
    %6 = tpu.matmul %5, %0, %cst {dimension_numbers = #tpu.dot_dimension_numbers<[1], [0], [0], [1], [0, 0, 1, 1], [], []>} : vector<64x16xbf16>, vector<16x4xbf16>, vector<64x4xf32> -> vector<64x4xf32>
    %7 = vector.broadcast %1 : vector<1x4xf32> to vector<64x4xf32>
    %8 = arith.mulf %6, %7 : vector<64x4xf32>
    %9 = vector.broadcast %2 : vector<1x4xf32> to vector<64x4xf32>
    %10 = arith.addf %8, %9 : vector<64x4xf32>
    %cst_10 = arith.constant 0.000000e+00 : f32
    %11 = vector.broadcast %cst_10 : f32 to vector<64x4xf32>
    %12 = arith.maximumf %10, %11 : vector<64x4xf32>
    %c0_i32 = arith.constant 0 : i32
    %13 = arith.cmpi sgt, %arg1, %c0_i32 : i32
    %cst_11 = arith.constant 1.000000e+00 : f32
    %cst_12 = arith.constant 0.000000e+00 : f32
    %14 = arith.select %13, %cst_11, %cst_12 : f32
    %15 = vector.broadcast %14 : f32 to vector<64x4xf32>
    %16 = arith.mulf %12, %15 : vector<64x4xf32>
    %c0_13 = arith.constant 0 : index
    %c0_14 = arith.constant 0 : index
    %c0_15 = arith.constant 0 : index
    %c0_16 = arith.constant 0 : index
    %c0_17 = arith.constant 0 : index
    %17 = vector.load %arg3[%c0_13, %c0_14, %c0_15, %c0_16, %c0_17] : memref<1x1x8x8x16xbf16, #tpu.memory_space<vmem>>, vector<1x1x8x8x16xbf16>
    %18 = vector.shape_cast %17 : vector<1x1x8x8x16xbf16> to vector<8x8x16xbf16>
    %19 = vector.shape_cast %18 : vector<8x8x16xbf16> to vector<64x16xbf16>
    %cst_18 = arith.constant dense<0.000000e+00> : vector<64x4xf32>
    %20 = tpu.matmul %19, %0, %cst_18 {dimension_numbers = #tpu.dot_dimension_numbers<[1], [0], [0], [1], [0, 0, 1, 1], [], []>} : vector<64x16xbf16>, vector<16x4xbf16>, vector<64x4xf32> -> vector<64x4xf32>
    %21 = vector.broadcast %1 : vector<1x4xf32> to vector<64x4xf32>
    %22 = arith.mulf %20, %21 : vector<64x4xf32>
    %23 = vector.broadcast %2 : vector<1x4xf32> to vector<64x4xf32>
    %24 = arith.addf %22, %23 : vector<64x4xf32>
    %cst_19 = arith.constant 0.000000e+00 : f32
    %25 = vector.broadcast %cst_19 : f32 to vector<64x4xf32>
    %26 = arith.maximumf %24, %25 : vector<64x4xf32>
    %c0_20 = arith.constant 0 : index
    %c0_21 = arith.constant 0 : index
    %c0_22 = arith.constant 0 : index
    %c0_23 = arith.constant 0 : index
    %c0_24 = arith.constant 0 : index
    %27 = vector.load %arg4[%c0_20, %c0_21, %c0_22, %c0_23, %c0_24] : memref<1x1x8x8x16xbf16, #tpu.memory_space<vmem>>, vector<1x1x8x8x16xbf16>
    %28 = vector.shape_cast %27 : vector<1x1x8x8x16xbf16> to vector<8x8x16xbf16>
    %29 = vector.shape_cast %28 : vector<8x8x16xbf16> to vector<64x16xbf16>
    %cst_25 = arith.constant dense<0.000000e+00> : vector<64x4xf32>
    %30 = tpu.matmul %29, %0, %cst_25 {dimension_numbers = #tpu.dot_dimension_numbers<[1], [0], [0], [1], [0, 0, 1, 1], [], []>} : vector<64x16xbf16>, vector<16x4xbf16>, vector<64x4xf32> -> vector<64x4xf32>
    %31 = vector.broadcast %1 : vector<1x4xf32> to vector<64x4xf32>
    %32 = arith.mulf %30, %31 : vector<64x4xf32>
    %33 = vector.broadcast %2 : vector<1x4xf32> to vector<64x4xf32>
    %34 = arith.addf %32, %33 : vector<64x4xf32>
    %cst_26 = arith.constant 0.000000e+00 : f32
    %35 = vector.broadcast %cst_26 : f32 to vector<64x4xf32>
    %36 = arith.maximumf %34, %35 : vector<64x4xf32>
    %c3_i32 = arith.constant 3 : i32
    %37 = arith.cmpi slt, %arg1, %c3_i32 : i32
    %cst_27 = arith.constant 1.000000e+00 : f32
    %cst_28 = arith.constant 0.000000e+00 : f32
    %38 = arith.select %37, %cst_27, %cst_28 : f32
    %39 = vector.broadcast %38 : f32 to vector<64x4xf32>
    %40 = arith.mulf %36, %39 : vector<64x4xf32>
    %41 = tpu.concatenate %16, %26, %40 in 1 : vector<64x4xf32>, vector<64x4xf32>, vector<64x4xf32> -> vector<64x12xf32>
    %cst_29 = arith.constant 0.000000e+00 : f32
    %42 = vector.broadcast %cst_29 : f32 to vector<1x10x12xf32>
    %cst_30 = arith.constant 0.000000e+00 : f32
    %43 = vector.broadcast %cst_30 : f32 to vector<8x1x12xf32>
    %c0_31 = arith.constant 0 : index
    %c0_32 = arith.constant 0 : index
    %c0_33 = arith.constant 0 : index
    %44 = vector.load %arg15[%c0_31, %c0_32, %c0_33] : memref<10x10x12xf32, #tpu.memory_space<vmem>>, vector<1x10x12xf32>
    tpu.vector_store %arg15[%c0_31, %c0_32, %c0_33], %42 {strides = array<i32>} : memref<10x10x12xf32, #tpu.memory_space<vmem>>, vector<1x10x12xf32>,
    %c9 = arith.constant 9 : index
    %c0_34 = arith.constant 0 : index
    %c0_35 = arith.constant 0 : index
    %45 = vector.load %arg15[%c9, %c0_34, %c0_35] : memref<10x10x12xf32, #tpu.memory_space<vmem>>, vector<1x10x12xf32>
    tpu.vector_store %arg15[%c9, %c0_34, %c0_35], %42 {strides = array<i32>} : memref<10x10x12xf32, #tpu.memory_space<vmem>>, vector<1x10x12xf32>,
    %c1 = arith.constant 1 : index
    %c0_36 = arith.constant 0 : index
    %c0_37 = arith.constant 0 : index
    %46 = vector.load %arg15[%c1, %c0_36, %c0_37] : memref<10x10x12xf32, #tpu.memory_space<vmem>>, vector<8x1x12xf32>
    tpu.vector_store %arg15[%c1, %c0_36, %c0_37], %43 {strides = array<i32>} : memref<10x10x12xf32, #tpu.memory_space<vmem>>, vector<8x1x12xf32>,
    %c1_38 = arith.constant 1 : index
    %c9_39 = arith.constant 9 : index
    %c0_40 = arith.constant 0 : index
    %47 = vector.load %arg15[%c1_38, %c9_39, %c0_40] : memref<10x10x12xf32, #tpu.memory_space<vmem>>, vector<8x1x12xf32>
    tpu.vector_store %arg15[%c1_38, %c9_39, %c0_40], %43 {strides = array<i32>} : memref<10x10x12xf32, #tpu.memory_space<vmem>>, vector<8x1x12xf32>,
    %48 = vector.shape_cast %41 : vector<64x12xf32> to vector<8x8x12xf32>
    %c1_41 = arith.constant 1 : index
    %c1_42 = arith.constant 1 : index
    %c0_43 = arith.constant 0 : index
    %49 = vector.load %arg15[%c1_41, %c1_42, %c0_43] : memref<10x10x12xf32, #tpu.memory_space<vmem>>, vector<8x8x12xf32>
    tpu.vector_store %arg15[%c1_41, %c1_42, %c0_43], %48 {strides = array<i32>} : memref<10x10x12xf32, #tpu.memory_space<vmem>>, vector<8x8x12xf32>,
    %c0_44 = arith.constant 0 : index
    %c0_45 = arith.constant 0 : index
    %c0_46 = arith.constant 0 : index
    %50 = vector.load %arg15[%c0_44, %c0_45, %c0_46] : memref<10x10x12xf32, #tpu.memory_space<vmem>>, vector<10x10x12xf32>
    %51 = arith.truncf %50 : vector<10x10x12xf32> to vector<10x10x12xbf16>
    %cst_47 = arith.constant 0.000000e+00 : f32
    %52 = vector.broadcast %cst_47 : f32 to vector<64x4xf32>
    %53 = vector.extract_strided_slice %51 {offsets = [0, 0, 0], sizes = [8, 8, 12], strides = [1, 1, 1]} : vector<10x10x12xbf16> to vector<8x8x12xbf16>
    %54 = vector.shape_cast %53 : vector<8x8x12xbf16> to vector<64x12xbf16>
    %c0_48 = arith.constant 0 : index
    %c0_49 = arith.constant 0 : index
    %c0_50 = arith.constant 0 : index
    %c0_51 = arith.constant 0 : index
    %55 = vector.load %arg8[%c0_48, %c0_49, %c0_50, %c0_51] : memref<3x3x12x4xbf16, #tpu.memory_space<vmem>>, vector<1x1x12x4xbf16>
    %56 = vector.shape_cast %55 : vector<1x1x12x4xbf16> to vector<12x4xbf16>
    %cst_52 = arith.constant dense<0.000000e+00> : vector<64x4xf32>
    %57 = tpu.matmul %54, %56, %cst_52 {dimension_numbers = #tpu.dot_dimension_numbers<[1], [0], [0], [1], [0, 0, 1, 1], [], []>} : vector<64x12xbf16>, vector<12x4xbf16>, vector<64x4xf32> -> vector<64x4xf32>
    %58 = arith.addf %52, %57 : vector<64x4xf32>
    %59 = vector.extract_strided_slice %51 {offsets = [0, 1, 0], sizes = [8, 8, 12], strides = [1, 1, 1]} : vector<10x10x12xbf16> to vector<8x8x12xbf16>
    %60 = vector.shape_cast %59 : vector<8x8x12xbf16> to vector<64x12xbf16>
    %c0_53 = arith.constant 0 : index
    %c1_54 = arith.constant 1 : index
    %c0_55 = arith.constant 0 : index
    %c0_56 = arith.constant 0 : index
    %61 = vector.load %arg8[%c0_53, %c1_54, %c0_55, %c0_56] : memref<3x3x12x4xbf16, #tpu.memory_space<vmem>>, vector<1x1x12x4xbf16>
    %62 = vector.shape_cast %61 : vector<1x1x12x4xbf16> to vector<12x4xbf16>
    %cst_57 = arith.constant dense<0.000000e+00> : vector<64x4xf32>
    %63 = tpu.matmul %60, %62, %cst_57 {dimension_numbers = #tpu.dot_dimension_numbers<[1], [0], [0], [1], [0, 0, 1, 1], [], []>} : vector<64x12xbf16>, vector<12x4xbf16>, vector<64x4xf32> -> vector<64x4xf32>
    %64 = arith.addf %58, %63 : vector<64x4xf32>
    %65 = vector.extract_strided_slice %51 {offsets = [0, 2, 0], sizes = [8, 8, 12], strides = [1, 1, 1]} : vector<10x10x12xbf16> to vector<8x8x12xbf16>
    %66 = vector.shape_cast %65 : vector<8x8x12xbf16> to vector<64x12xbf16>
    %c0_58 = arith.constant 0 : index
    %c2 = arith.constant 2 : index
    %c0_59 = arith.constant 0 : index
    %c0_60 = arith.constant 0 : index
    %67 = vector.load %arg8[%c0_58, %c2, %c0_59, %c0_60] : memref<3x3x12x4xbf16, #tpu.memory_space<vmem>>, vector<1x1x12x4xbf16>
    %68 = vector.shape_cast %67 : vector<1x1x12x4xbf16> to vector<12x4xbf16>
    %cst_61 = arith.constant dense<0.000000e+00> : vector<64x4xf32>
    %69 = tpu.matmul %66, %68, %cst_61 {dimension_numbers = #tpu.dot_dimension_numbers<[1], [0], [0], [1], [0, 0, 1, 1], [], []>} : vector<64x12xbf16>, vector<12x4xbf16>, vector<64x4xf32> -> vector<64x4xf32>
    %70 = arith.addf %64, %69 : vector<64x4xf32>
    %71 = vector.extract_strided_slice %51 {offsets = [1, 0, 0], sizes = [8, 8, 12], strides = [1, 1, 1]} : vector<10x10x12xbf16> to vector<8x8x12xbf16>
    %72 = vector.shape_cast %71 : vector<8x8x12xbf16> to vector<64x12xbf16>
    %c1_62 = arith.constant 1 : index
    %c0_63 = arith.constant 0 : index
    %c0_64 = arith.constant 0 : index
    %c0_65 = arith.constant 0 : index
    %73 = vector.load %arg8[%c1_62, %c0_63, %c0_64, %c0_65] : memref<3x3x12x4xbf16, #tpu.memory_space<vmem>>, vector<1x1x12x4xbf16>
    %74 = vector.shape_cast %73 : vector<1x1x12x4xbf16> to vector<12x4xbf16>
    %cst_66 = arith.constant dense<0.000000e+00> : vector<64x4xf32>
    %75 = tpu.matmul %72, %74, %cst_66 {dimension_numbers = #tpu.dot_dimension_numbers<[1], [0], [0], [1], [0, 0, 1, 1], [], []>} : vector<64x12xbf16>, vector<12x4xbf16>, vector<64x4xf32> -> vector<64x4xf32>
    %76 = arith.addf %70, %75 : vector<64x4xf32>
    %77 = vector.extract_strided_slice %51 {offsets = [1, 1, 0], sizes = [8, 8, 12], strides = [1, 1, 1]} : vector<10x10x12xbf16> to vector<8x8x12xbf16>
    %78 = vector.shape_cast %77 : vector<8x8x12xbf16> to vector<64x12xbf16>
    %c1_67 = arith.constant 1 : index
    %c1_68 = arith.constant 1 : index
    %c0_69 = arith.constant 0 : index
    %c0_70 = arith.constant 0 : index
    %79 = vector.load %arg8[%c1_67, %c1_68, %c0_69, %c0_70] : memref<3x3x12x4xbf16, #tpu.memory_space<vmem>>, vector<1x1x12x4xbf16>
    %80 = vector.shape_cast %79 : vector<1x1x12x4xbf16> to vector<12x4xbf16>
    %cst_71 = arith.constant dense<0.000000e+00> : vector<64x4xf32>
    %81 = tpu.matmul %78, %80, %cst_71 {dimension_numbers = #tpu.dot_dimension_numbers<[1], [0], [0], [1], [0, 0, 1, 1], [], []>} : vector<64x12xbf16>, vector<12x4xbf16>, vector<64x4xf32> -> vector<64x4xf32>
    %82 = arith.addf %76, %81 : vector<64x4xf32>
    %83 = vector.extract_strided_slice %51 {offsets = [1, 2, 0], sizes = [8, 8, 12], strides = [1, 1, 1]} : vector<10x10x12xbf16> to vector<8x8x12xbf16>
    %84 = vector.shape_cast %83 : vector<8x8x12xbf16> to vector<64x12xbf16>
    %c1_72 = arith.constant 1 : index
    %c2_73 = arith.constant 2 : index
    %c0_74 = arith.constant 0 : index
    %c0_75 = arith.constant 0 : index
    %85 = vector.load %arg8[%c1_72, %c2_73, %c0_74, %c0_75] : memref<3x3x12x4xbf16, #tpu.memory_space<vmem>>, vector<1x1x12x4xbf16>
    %86 = vector.shape_cast %85 : vector<1x1x12x4xbf16> to vector<12x4xbf16>
    %cst_76 = arith.constant dense<0.000000e+00> : vector<64x4xf32>
    %87 = tpu.matmul %84, %86, %cst_76 {dimension_numbers = #tpu.dot_dimension_numbers<[1], [0], [0], [1], [0, 0, 1, 1], [], []>} : vector<64x12xbf16>, vector<12x4xbf16>, vector<64x4xf32> -> vector<64x4xf32>
    %88 = arith.addf %82, %87 : vector<64x4xf32>
    %89 = vector.extract_strided_slice %51 {offsets = [2, 0, 0], sizes = [8, 8, 12], strides = [1, 1, 1]} : vector<10x10x12xbf16> to vector<8x8x12xbf16>
    %90 = vector.shape_cast %89 : vector<8x8x12xbf16> to vector<64x12xbf16>
    %c2_77 = arith.constant 2 : index
    %c0_78 = arith.constant 0 : index
    %c0_79 = arith.constant 0 : index
    %c0_80 = arith.constant 0 : index
    %91 = vector.load %arg8[%c2_77, %c0_78, %c0_79, %c0_80] : memref<3x3x12x4xbf16, #tpu.memory_space<vmem>>, vector<1x1x12x4xbf16>
    %92 = vector.shape_cast %91 : vector<1x1x12x4xbf16> to vector<12x4xbf16>
    %cst_81 = arith.constant dense<0.000000e+00> : vector<64x4xf32>
    %93 = tpu.matmul %90, %92, %cst_81 {dimension_numbers = #tpu.dot_dimension_numbers<[1], [0], [0], [1], [0, 0, 1, 1], [], []>} : vector<64x12xbf16>, vector<12x4xbf16>, vector<64x4xf32> -> vector<64x4xf32>
    %94 = arith.addf %88, %93 : vector<64x4xf32>
    %95 = vector.extract_strided_slice %51 {offsets = [2, 1, 0], sizes = [8, 8, 12], strides = [1, 1, 1]} : vector<10x10x12xbf16> to vector<8x8x12xbf16>
    %96 = vector.shape_cast %95 : vector<8x8x12xbf16> to vector<64x12xbf16>
    %c2_82 = arith.constant 2 : index
    %c1_83 = arith.constant 1 : index
    %c0_84 = arith.constant 0 : index
    %c0_85 = arith.constant 0 : index
    %97 = vector.load %arg8[%c2_82, %c1_83, %c0_84, %c0_85] : memref<3x3x12x4xbf16, #tpu.memory_space<vmem>>, vector<1x1x12x4xbf16>
    %98 = vector.shape_cast %97 : vector<1x1x12x4xbf16> to vector<12x4xbf16>
    %cst_86 = arith.constant dense<0.000000e+00> : vector<64x4xf32>
    %99 = tpu.matmul %96, %98, %cst_86 {dimension_numbers = #tpu.dot_dimension_numbers<[1], [0], [0], [1], [0, 0, 1, 1], [], []>} : vector<64x12xbf16>, vector<12x4xbf16>, vector<64x4xf32> -> vector<64x4xf32>
    %100 = arith.addf %94, %99 : vector<64x4xf32>
    %101 = vector.extract_strided_slice %51 {offsets = [2, 2, 0], sizes = [8, 8, 12], strides = [1, 1, 1]} : vector<10x10x12xbf16> to vector<8x8x12xbf16>
    %102 = vector.shape_cast %101 : vector<8x8x12xbf16> to vector<64x12xbf16>
    %c2_87 = arith.constant 2 : index
    %c2_88 = arith.constant 2 : index
    %c0_89 = arith.constant 0 : index
    %c0_90 = arith.constant 0 : index
    %103 = vector.load %arg8[%c2_87, %c2_88, %c0_89, %c0_90] : memref<3x3x12x4xbf16, #tpu.memory_space<vmem>>, vector<1x1x12x4xbf16>
    %104 = vector.shape_cast %103 : vector<1x1x12x4xbf16> to vector<12x4xbf16>
    %cst_91 = arith.constant dense<0.000000e+00> : vector<64x4xf32>
    %105 = tpu.matmul %102, %104, %cst_91 {dimension_numbers = #tpu.dot_dimension_numbers<[1], [0], [0], [1], [0, 0, 1, 1], [], []>} : vector<64x12xbf16>, vector<12x4xbf16>, vector<64x4xf32> -> vector<64x4xf32>
    %106 = arith.addf %100, %105 : vector<64x4xf32>
    %c0_92 = arith.constant 0 : index
    %c0_93 = arith.constant 0 : index
    %107 = vector.load %arg9[%c0_92, %c0_93] : memref<1x4xf32, #tpu.memory_space<vmem>>, vector<1x4xf32>
    %108 = vector.broadcast %107 : vector<1x4xf32> to vector<64x4xf32>
    %109 = arith.mulf %106, %108 : vector<64x4xf32>
    %c0_94 = arith.constant 0 : index
    %c0_95 = arith.constant 0 : index
    %110 = vector.load %arg10[%c0_94, %c0_95] : memref<1x4xf32, #tpu.memory_space<vmem>>, vector<1x4xf32>
    %111 = vector.broadcast %110 : vector<1x4xf32> to vector<64x4xf32>
    %112 = arith.addf %109, %111 : vector<64x4xf32>
    %cst_96 = arith.constant 0.000000e+00 : f32
    %113 = vector.broadcast %cst_96 : f32 to vector<64x4xf32>
    %114 = arith.maximumf %112, %113 : vector<64x4xf32>
    %115 = arith.truncf %114 : vector<64x4xf32> to vector<64x4xbf16>
    %c0_97 = arith.constant 0 : index
    %c0_98 = arith.constant 0 : index
    %116 = vector.load %arg11[%c0_97, %c0_98] : memref<4x16xbf16, #tpu.memory_space<vmem>>, vector<4x16xbf16>
    %cst_99 = arith.constant dense<0.000000e+00> : vector<64x16xf32>
    %117 = tpu.matmul %115, %116, %cst_99 {dimension_numbers = #tpu.dot_dimension_numbers<[1], [0], [0], [1], [0, 0, 1, 1], [], []>} : vector<64x4xbf16>, vector<4x16xbf16>, vector<64x16xf32> -> vector<64x16xf32>
    %c0_100 = arith.constant 0 : index
    %c0_101 = arith.constant 0 : index
    %c0_102 = arith.constant 0 : index
    %c0_103 = arith.constant 0 : index
    %c0_104 = arith.constant 0 : index
    %118 = vector.load %arg3[%c0_100, %c0_101, %c0_102, %c0_103, %c0_104] : memref<1x1x8x8x16xbf16, #tpu.memory_space<vmem>>, vector<1x1x8x8x16xbf16>
    %119 = vector.shape_cast %118 : vector<1x1x8x8x16xbf16> to vector<8x8x16xbf16>
    %120 = vector.shape_cast %119 : vector<8x8x16xbf16> to vector<64x16xbf16>
    %121 = arith.extf %120 : vector<64x16xbf16> to vector<64x16xf32>
    %c0_105 = arith.constant 0 : index
    %c0_106 = arith.constant 0 : index
    %122 = vector.load %arg12[%c0_105, %c0_106] : memref<1x16xf32, #tpu.memory_space<vmem>>, vector<1x16xf32>
    %123 = vector.broadcast %122 : vector<1x16xf32> to vector<64x16xf32>
    %124 = arith.mulf %117, %123 : vector<64x16xf32>
    %c0_107 = arith.constant 0 : index
    %c0_108 = arith.constant 0 : index
    %125 = vector.load %arg13[%c0_107, %c0_108] : memref<1x16xf32, #tpu.memory_space<vmem>>, vector<1x16xf32>
    %126 = vector.broadcast %125 : vector<1x16xf32> to vector<64x16xf32>
    %127 = arith.addf %124, %126 : vector<64x16xf32>
    %128 = arith.addf %127, %121 : vector<64x16xf32>
    %cst_109 = arith.constant 0.000000e+00 : f32
    %129 = vector.broadcast %cst_109 : f32 to vector<64x16xf32>
    %130 = arith.maximumf %128, %129 : vector<64x16xf32>
    %131 = vector.shape_cast %130 : vector<64x16xf32> to vector<8x8x16xf32>
    %132 = arith.truncf %131 : vector<8x8x16xf32> to vector<8x8x16xbf16>
    %c0_110 = arith.constant 0 : index
    %c0_111 = arith.constant 0 : index
    %c0_112 = arith.constant 0 : index
    %c0_113 = arith.constant 0 : index
    %c0_114 = arith.constant 0 : index
    %133 = vector.load %arg14[%c0_110, %c0_111, %c0_112, %c0_113, %c0_114] : memref<1x1x8x8x16xbf16, #tpu.memory_space<vmem>>, vector<1x1x8x8x16xbf16>
    %134 = vector.shape_cast %133 : vector<1x1x8x8x16xbf16> to vector<8x8x16xbf16>
    %135 = vector.shape_cast %132 : vector<8x8x16xbf16> to vector<1x1x8x8x16xbf16>
    tpu.vector_store %arg14[%c0_110, %c0_111, %c0_112, %c0_113, %c0_114], %135 {strides = array<i32>} : memref<1x1x8x8x16xbf16, #tpu.memory_space<vmem>>, vector<1x1x8x8x16xbf16>,
    return
  }
  func.func @transform_0(%arg0: i32, %arg1: i32) -> (i32, i32, i32, i32, i32) {
    %c1_i32 = arith.constant 1 : i32
    %0 = arith.subi %arg1, %c1_i32 : i32
    %c0_i32 = arith.constant 0 : i32
    %1 = arith.maxsi %0, %c0_i32 : i32
    %c0_i32_0 = arith.constant 0 : i32
    %c0_i32_1 = arith.constant 0 : i32
    %c0_i32_2 = arith.constant 0 : i32
    %c0_i32_3 = arith.constant 0 : i32
    return %arg0, %1, %c0_i32_0, %c0_i32_1, %c0_i32_2 : i32, i32, i32, i32, i32
  }
  func.func @transform_1(%arg0: i32, %arg1: i32) -> (i32, i32, i32, i32, i32) {
    %c0_i32 = arith.constant 0 : i32
    %c0_i32_0 = arith.constant 0 : i32
    %c0_i32_1 = arith.constant 0 : i32
    %c0_i32_2 = arith.constant 0 : i32
    return %arg0, %arg1, %c0_i32, %c0_i32_0, %c0_i32_1 : i32, i32, i32, i32, i32
  }
  func.func @transform_2(%arg0: i32, %arg1: i32) -> (i32, i32, i32, i32, i32) {
    %c1_i32 = arith.constant 1 : i32
    %0 = arith.addi %arg1, %c1_i32 : i32
    %c3_i32 = arith.constant 3 : i32
    %1 = arith.minsi %0, %c3_i32 : i32
    %c0_i32 = arith.constant 0 : i32
    %c0_i32_0 = arith.constant 0 : i32
    %c0_i32_1 = arith.constant 0 : i32
    %c0_i32_2 = arith.constant 0 : i32
    return %arg0, %1, %c0_i32, %c0_i32_0, %c0_i32_1 : i32, i32, i32, i32, i32
  }
  func.func @transform_3(%arg0: i32, %arg1: i32) -> (i32, i32) {
    %c0_i32 = arith.constant 0 : i32
    %c0_i32_0 = arith.constant 0 : i32
    %c0_i32_1 = arith.constant 0 : i32
    return %c0_i32, %c0_i32_0 : i32, i32
  }
  func.func @transform_4(%arg0: i32, %arg1: i32) -> (i32, i32) {
    %c0_i32 = arith.constant 0 : i32
    %c0_i32_0 = arith.constant 0 : i32
    %c0_i32_1 = arith.constant 0 : i32
    return %c0_i32, %c0_i32_0 : i32, i32
  }
  func.func @transform_5(%arg0: i32, %arg1: i32) -> (i32, i32) {
    %c0_i32 = arith.constant 0 : i32
    %c0_i32_0 = arith.constant 0 : i32
    %c0_i32_1 = arith.constant 0 : i32
    return %c0_i32, %c0_i32_0 : i32, i32
  }
  func.func @transform_6(%arg0: i32, %arg1: i32) -> (i32, i32, i32, i32) {
    %c0_i32 = arith.constant 0 : i32
    %c0_i32_0 = arith.constant 0 : i32
    %c0_i32_1 = arith.constant 0 : i32
    %c0_i32_2 = arith.constant 0 : i32
    %c0_i32_3 = arith.constant 0 : i32
    return %c0_i32, %c0_i32_0, %c0_i32_1, %c0_i32_2 : i32, i32, i32, i32
  }
  func.func @transform_7(%arg0: i32, %arg1: i32) -> (i32, i32) {
    %c0_i32 = arith.constant 0 : i32
    %c0_i32_0 = arith.constant 0 : i32
    %c0_i32_1 = arith.constant 0 : i32
    return %c0_i32, %c0_i32_0 : i32, i32
  }
  func.func @transform_8(%arg0: i32, %arg1: i32) -> (i32, i32) {
    %c0_i32 = arith.constant 0 : i32
    %c0_i32_0 = arith.constant 0 : i32
    %c0_i32_1 = arith.constant 0 : i32
    return %c0_i32, %c0_i32_0 : i32, i32
  }
  func.func @transform_9(%arg0: i32, %arg1: i32) -> (i32, i32) {
    %c0_i32 = arith.constant 0 : i32
    %c0_i32_0 = arith.constant 0 : i32
    %c0_i32_1 = arith.constant 0 : i32
    return %c0_i32, %c0_i32_0 : i32, i32
  }
  func.func @transform_10(%arg0: i32, %arg1: i32) -> (i32, i32) {
    %c0_i32 = arith.constant 0 : i32
    %c0_i32_0 = arith.constant 0 : i32
    %c0_i32_1 = arith.constant 0 : i32
    return %c0_i32, %c0_i32_0 : i32, i32
  }
  func.func @transform_11(%arg0: i32, %arg1: i32) -> (i32, i32) {
    %c0_i32 = arith.constant 0 : i32
    %c0_i32_0 = arith.constant 0 : i32
    %c0_i32_1 = arith.constant 0 : i32
    return %c0_i32, %c0_i32_0 : i32, i32
  }
  func.func @transform_12(%arg0: i32, %arg1: i32) -> (i32, i32, i32, i32, i32) {
    %c0_i32 = arith.constant 0 : i32
    %c0_i32_0 = arith.constant 0 : i32
    %c0_i32_1 = arith.constant 0 : i32
    %c0_i32_2 = arith.constant 0 : i32
    return %arg0, %arg1, %c0_i32, %c0_i32_0, %c0_i32_1 : i32, i32, i32, i32, i32
  }
}

</mosaic_0001>

<llo_original>
// kernel: bottleneck_forward.1
$region0: #{bottleneck_forward.1}
  #allocation0 [shape = 'u32[]', space=smem, size = 0x4, offset = 0x4, fixed_abs, tag = 'smem constant byte address 0x4 - core index']
  #allocation1 [shape = 'u32[72,128]{1,0:T(1,128)}', space=vmem, size = 0x9000, scoped, tag = 'internal scratch']
  #allocation2 [shape = 'f32[10,10,12]{2,1,0:T(8,128)}', space=vmem, size = 0x14000, scoped, tag = 'scratch operand']
  %s0 = inlined_call_operand.vmem [shape: bf16[2,4,8,8,16], index: 0, kind: input, shape index: {}, may-alias: {0,1,2}]
  %s1 = inlined_call_operand.vmem [shape: bf16[2,4,8,8,16], index: 1, kind: input, shape index: {}, may-alias: {0,1,2}]
  %s2 = inlined_call_operand.vmem [shape: bf16[2,4,8,8,16], index: 2, kind: input, shape index: {}, may-alias: {0,1,2}]
  %s3 = inlined_call_operand.vmem [shape: bf16[16,4], index: 3, kind: input, shape index: {}]
  %s4 = inlined_call_operand.vmem [shape: f32[1,4], index: 4, kind: input, shape index: {}]
  %s5 = inlined_call_operand.vmem [shape: f32[1,4], index: 5, kind: input, shape index: {}]
  %s6 = inlined_call_operand.vmem [shape: bf16[3,3,12,4], index: 6, kind: input, shape index: {}]
  %s7 = inlined_call_operand.vmem [shape: f32[1,4], index: 7, kind: input, shape index: {}]
  %s8 = inlined_call_operand.vmem [shape: f32[1,4], index: 8, kind: input, shape index: {}]
  %s9 = inlined_call_operand.vmem [shape: bf16[4,16], index: 9, kind: input, shape index: {}]
  %s10 = inlined_call_operand.vmem [shape: f32[1,16], index: 10, kind: input, shape index: {}]
  %s11 = inlined_call_operand.vmem [shape: f32[1,16], index: 11, kind: input, shape index: {}]
  %s12 = inlined_call_operand.vmem [shape: bf16[2,4,8,8,16], index: 12, kind: output, shape index: {}]
  %s13 = sld [smem:[#allocation0]]
  $region81: #{bottleneck_forward.1} parent=0
    _
  %s15 = ssub.s32 1, %s13
  %s16 = scalar_select 0, %s15, %s13
  loop: start=0, step=1, limit=10
  $region2: #{bottleneck_forward.1} parent=0 // loop_pre_header
    _
  $region3: #{bottleneck_forward.1} parent=0 // loop_header
    %s18 = sphi 0, %s22
    %p19 = scmp.ge.s32.totalorder %s18, 10
    %s25 = sphi 0, %s37
    %s26 = sphi 0, %s33
    %s27 = sphi 0, %s25
    %s28 = sphi 0, %s26
    %s29 = sphi 0, %s27
    %s30 = sphi 0, %s28
    %s48 = sphi 0, %s50
    %s51 = sphi 0, %s48
    %s52 = sphi 0, %s51
    %s68 = sphi 0, %s52
    %s76 = sphi 0, %s78
    %s79 = sphi 0, %s76
    %s80 = sphi 0, %s79
    %s96 = sphi 0, %s80
    %s110 = sphi 0, %s112
    %s113 = sphi 0, %s110
    %s114 = sphi 0, %s113
    %s130 = sphi 0, %s114
    %s134 = sphi 0, %s134
    %s136 = sphi 0, %s134
    %s137 = sphi 0, %s136
    %s151 = sphi 0, %s137
    %s155 = sphi 0, %s155
    %s157 = sphi 0, %s155
    %s158 = sphi 0, %s157
    %s172 = sphi 0, %s158
    %s176 = sphi 0, %s176
    %s178 = sphi 0, %s176
    %s179 = sphi 0, %s178
    %s193 = sphi 0, %s179
    %s197 = sphi 0, %s197
    %s199 = sphi 0, %s197
    %s200 = sphi 0, %s199
    %s214 = sphi 0, %s200
    %s218 = sphi 0, %s218
    %s220 = sphi 0, %s218
    %s221 = sphi 0, %s220
    %s235 = sphi 0, %s221
    %s239 = sphi 0, %s239
    %s241 = sphi 0, %s239
    %s242 = sphi 0, %s241
    %s256 = sphi 0, %s242
    %s260 = sphi 0, %s260
    %s262 = sphi 0, %s260
    %s263 = sphi 0, %s262
    %s277 = sphi 0, %s263
    %s281 = sphi 0, %s281
    %s283 = sphi 0, %s281
    %s284 = sphi 0, %s283
    %s298 = sphi 0, %s284
    %s302 = sphi 0, %s302
    %s304 = sphi 0, %s302
    %s305 = sphi 0, %s304
    %s319 = sphi 0, %s305
    %s327 = sphi 0, %s329
    %s330 = sphi 0, %s327
    %s331 = sphi 0, %s330
    %s347 = sphi 0, %s331
  $region4: #{bottleneck_forward.1} parent=0 // loop_header_branch
    %21 = sbr.rel (%p19) target = $region8
  $region5: #{bottleneck_forward.1} parent=0 // loop_body
    %s23 = ssub.s32 %s18, 1
    %s24 = ssub.s32 %s18, 2
    %s31 = sadd.s32 1, %s26
    %p32 = scmp.ge.s32.totalorder %s31, 4
    %s33 = scalar_select %p32, 0, %s31
    %s34 = sadd.s32 1, %s25
    %s35 = scalar_select %p32, %s34, %s25
    %p36 = scmp.ge.s32.totalorder %s35, 2
    %s37 = scalar_select %p36, 0, %s35
    %s38 = ssub.s32 %s26, 1
    %p39 = scmp.gt.s32.totalorder %s38, 0
    %s40 = scalar_select %p39, %s38, 0
    %s41 = ssub.s32 %s33, 1
    %p42 = scmp.gt.s32.totalorder %s41, 0
    %s43 = scalar_select %p42, %s41, 0
    %s44 = ssub.s32 %s25, %s37
    %s45 = ssub.s32 %s40, %s43
    %s46 = sor.u32 %s44, %s45
    %p47 = scmp.eq.s32.totalorder %s46, 0
    %s49 = sadd.s32 %s48, 1
    %s50 = scalar_select %p47, %s48, %s49
    %p53 = pneg %p47
    %p54 = scmp.eq.s32.totalorder %s18, 7
    %p55 = por %p53, %p54
    %p56 = scmp.ne.s32.totalorder %s48, %s51
    %p57 = scmp.eq.s32.totalorder %s18, 0
    %p58 = por %p56, %p57
    %p59 = scmp.ne.s32.totalorder %s48, %s51
    %p60 = scmp.eq.s32.totalorder %s23, 7
    %p61 = por %p59, %p60
    %p62 = scmp.ne.s32.totalorder %s51, %s52
    %p63 = scmp.eq.s32.totalorder %s23, 0
    %p64 = por %p62, %p63
    %p65 = scmp.ne.s32.totalorder %s51, %s52
    %p66 = scmp.eq.s32.totalorder %s24, 7
    %p67 = por %p65, %p66
    %p69 = scmp.ne.s32.totalorder %s52, %s68
    %p70 = scmp.eq.s32.totalorder %s24, 0
    %p71 = por %p69, %p70
    %s72 = ssub.s32 %s25, %s37
    %s73 = ssub.s32 %s26, %s33
    %s74 = sor.u32 %s72, %s73
    %p75 = scmp.eq.s32.totalorder %s74, 0
    %s77 = sadd.s32 %s76, 1
    %s78 = scalar_select %p75, %s76, %s77
    %p81 = pneg %p75
    %p82 = scmp.eq.s32.totalorder %s18, 7
    %p83 = por %p81, %p82
    %p84 = scmp.ne.s32.totalorder %s76, %s79
    %p85 = scmp.eq.s32.totalorder %s18, 0
    %p86 = por %p84, %p85
    %p87 = scmp.ne.s32.totalorder %s76, %s79
    %p88 = scmp.eq.s32.totalorder %s23, 7
    %p89 = por %p87, %p88
    %p90 = scmp.ne.s32.totalorder %s79, %s80
    %p91 = scmp.eq.s32.totalorder %s23, 0
    %p92 = por %p90, %p91
    %p93 = scmp.ne.s32.totalorder %s79, %s80
    %p94 = scmp.eq.s32.totalorder %s24, 7
    %p95 = por %p93, %p94
    %p97 = scmp.ne.s32.totalorder %s80, %s96
    %p98 = scmp.eq.s32.totalorder %s24, 0
    %p99 = por %p97, %p98
    %s100 = sadd.s32 %s26, 1
    %p101 = scmp.lt.s32.totalorder %s100, 3
    %s102 = scalar_select %p101, %s100, 3
    %s103 = sadd.s32 %s33, 1
    %p104 = scmp.lt.s32.totalorder %s103, 3
    %s105 = scalar_select %p104, %s103, 3
    %s106 = ssub.s32 %s25, %s37
    %s107 = ssub.s32 %s102, %s105
    %s108 = sor.u32 %s106, %s107
    %p109 = scmp.eq.s32.totalorder %s108, 0
    %s111 = sadd.s32 %s110, 1
    %s112 = scalar_select %p109, %s110, %s111
    %p115 = pneg %p109
    %p116 = scmp.eq.s32.totalorder %s18, 7
    %p117 = por %p115, %p116
    %p118 = scmp.ne.s32.totalorder %s110, %s113
    %p119 = scmp.eq.s32.totalorder %s18, 0
    %p120 = por %p118, %p119
    %p121 = scmp.ne.s32.totalorder %s110, %s113
    %p122 = scmp.eq.s32.totalorder %s23, 7
    %p123 = por %p121, %p122
    %p124 = scmp.ne.s32.totalorder %s113, %s114
    %p125 = scmp.eq.s32.totalorder %s23, 0
    %p126 = por %p124, %p125
    %p127 = scmp.ne.s32.totalorder %s113, %s114
    %p128 = scmp.eq.s32.totalorder %s24, 7
    %p129 = por %p127, %p128
    %p131 = scmp.ne.s32.totalorder %s114, %s130
    %p132 = scmp.eq.s32.totalorder %s24, 0
    %p133 = por %p131, %p132
    %s135 = sadd.s32 %s134, 1
    %p138 = scmp.eq.s32.totalorder %s18, 7
    %p139 = scmp.ne.s32.totalorder %s134, %s136
    %p140 = scmp.eq.s32.totalorder %s18, 0
    %p141 = por %p139, %p140
    %p142 = scmp.ne.s32.totalorder %s134, %s136
    %p143 = scmp.eq.s32.totalorder %s23, 7
    %p144 = por %p142, %p143
    %p145 = scmp.ne.s32.totalorder %s136, %s137
    %p146 = scmp.eq.s32.totalorder %s23, 0
    %p147 = por %p145, %p146
    %p148 = scmp.ne.s32.totalorder %s136, %s137
    %p149 = scmp.eq.s32.totalorder %s24, 7
    %p150 = por %p148, %p149
    %p152 = scmp.ne.s32.totalorder %s137, %s151
    %p153 = scmp.eq.s32.totalorder %s24, 0
    %p154 = por %p152, %p153
    %s156 = sadd.s32 %s155, 1
    %p159 = scmp.eq.s32.totalorder %s18, 7
    %p160 = scmp.ne.s32.totalorder %s155, %s157
    %p161 = scmp.eq.s32.totalorder %s18, 0
    %p162 = por %p160, %p161
    %p163 = scmp.ne.s32.totalorder %s155, %s157
    %p164 = scmp.eq.s32.totalorder %s23, 7
    %p165 = por %p163, %p164
    %p166 = scmp.ne.s32.totalorder %s157, %s158
    %p167 = scmp.eq.s32.totalorder %s23, 0
    %p168 = por %p166, %p167
    %p169 = scmp.ne.s32.totalorder %s157, %s158
    %p170 = scmp.eq.s32.totalorder %s24, 7
    %p171 = por %p169, %p170
    %p173 = scmp.ne.s32.totalorder %s158, %s172
    %p174 = scmp.eq.s32.totalorder %s24, 0
    %p175 = por %p173, %p174
    %s177 = sadd.s32 %s176, 1
    %p180 = scmp.eq.s32.totalorder %s18, 7
    %p181 = scmp.ne.s32.totalorder %s176, %s178
    %p182 = scmp.eq.s32.totalorder %s18, 0
    %p183 = por %p181, %p182
    %p184 = scmp.ne.s32.totalorder %s176, %s178
    %p185 = scmp.eq.s32.totalorder %s23, 7
    %p186 = por %p184, %p185
    %p187 = scmp.ne.s32.totalorder %s178, %s179
    %p188 = scmp.eq.s32.totalorder %s23, 0
    %p189 = por %p187, %p188
    %p190 = scmp.ne.s32.totalorder %s178, %s179
    %p191 = scmp.eq.s32.totalorder %s24, 7
    %p192 = por %p190, %p191
    %p194 = scmp.ne.s32.totalorder %s179, %s193
    %p195 = scmp.eq.s32.totalorder %s24, 0
    %p196 = por %p194, %p195
    %s198 = sadd.s32 %s197, 1
    %p201 = scmp.eq.s32.totalorder %s18, 7
    %p202 = scmp.ne.s32.totalorder %s197, %s199
    %p203 = scmp.eq.s32.totalorder %s18, 0
    %p204 = por %p202, %p203
    %p205 = scmp.ne.s32.totalorder %s197, %s199
    %p206 = scmp.eq.s32.totalorder %s23, 7
    %p207 = por %p205, %p206
    %p208 = scmp.ne.s32.totalorder %s199, %s200
    %p209 = scmp.eq.s32.totalorder %s23, 0
    %p210 = por %p208, %p209
    %p211 = scmp.ne.s32.totalorder %s199, %s200
    %p212 = scmp.eq.s32.totalorder %s24, 7
    %p213 = por %p211, %p212
    %p215 = scmp.ne.s32.totalorder %s200, %s214
    %p216 = scmp.eq.s32.totalorder %s24, 0
    %p217 = por %p215, %p216
    %s219 = sadd.s32 %s218, 1
    %p222 = scmp.eq.s32.totalorder %s18, 7
    %p223 = scmp.ne.s32.totalorder %s218, %s220
    %p224 = scmp.eq.s32.totalorder %s18, 0
    %p225 = por %p223, %p224
    %p226 = scmp.ne.s32.totalorder %s218, %s220
    %p227 = scmp.eq.s32.totalorder %s23, 7
    %p228 = por %p226, %p227
    %p229 = scmp.ne.s32.totalorder %s220, %s221
    %p230 = scmp.eq.s32.totalorder %s23, 0
    %p231 = por %p229, %p230
    %p232 = scmp.ne.s32.totalorder %s220, %s221
    %p233 = scmp.eq.s32.totalorder %s24, 7
    %p234 = por %p232, %p233
    %p236 = scmp.ne.s32.totalorder %s221, %s235
    %p237 = scmp.eq.s32.totalorder %s24, 0
    %p238 = por %p236, %p237
    %s240 = sadd.s32 %s239, 1
    %p243 = scmp.eq.s32.totalorder %s18, 7
    %p244 = scmp.ne.s32.totalorder %s239, %s241
    %p245 = scmp.eq.s32.totalorder %s18, 0
    %p246 = por %p244, %p245
    %p247 = scmp.ne.s32.totalorder %s239, %s241
    %p248 = scmp.eq.s32.totalorder %s23, 7
    %p249 = por %p247, %p248
    %p250 = scmp.ne.s32.totalorder %s241, %s242
    %p251 = scmp.eq.s32.totalorder %s23, 0
    %p252 = por %p250, %p251
    %p253 = scmp.ne.s32.totalorder %s241, %s242
    %p254 = scmp.eq.s32.totalorder %s24, 7
    %p255 = por %p253, %p254
    %p257 = scmp.ne.s32.totalorder %s242, %s256
    %p258 = scmp.eq.s32.totalorder %s24, 0
    %p259 = por %p257, %p258
    %s261 = sadd.s32 %s260, 1
    %p264 = scmp.eq.s32.totalorder %s18, 7
    %p265 = scmp.ne.s32.totalorder %s260, %s262
    %p266 = scmp.eq.s32.totalorder %s18, 0
    %p267 = por %p265, %p266
    %p268 = scmp.ne.s32.totalorder %s260, %s262
    %p269 = scmp.eq.s32.totalorder %s23, 7
    %p270 = por %p268, %p269
    %p271 = scmp.ne.s32.totalorder %s262, %s263
    %p272 = scmp.eq.s32.totalorder %s23, 0
    %p273 = por %p271, %p272
    %p274 = scmp.ne.s32.totalorder %s262, %s263
    %p275 = scmp.eq.s32.totalorder %s24, 7
    %p276 = por %p274, %p275
    %p278 = scmp.ne.s32.totalorder %s263, %s277
    %p279 = scmp.eq.s32.totalorder %s24, 0
    %p280 = por %p278, %p279
    %s282 = sadd.s32 %s281, 1
    %p285 = scmp.eq.s32.totalorder %s18, 7
    %p286 = scmp.ne.s32.totalorder %s281, %s283
    %p287 = scmp.eq.s32.totalorder %s18, 0
    %p288 = por %p286, %p287
    %p289 = scmp.ne.s32.totalorder %s281, %s283
    %p290 = scmp.eq.s32.totalorder %s23, 7
    %p291 = por %p289, %p290
    %p292 = scmp.ne.s32.totalorder %s283, %s284
    %p293 = scmp.eq.s32.totalorder %s23, 0
    %p294 = por %p292, %p293
    %p295 = scmp.ne.s32.totalorder %s283, %s284
    %p296 = scmp.eq.s32.totalorder %s24, 7
    %p297 = por %p295, %p296
    %p299 = scmp.ne.s32.totalorder %s284, %s298
    %p300 = scmp.eq.s32.totalorder %s24, 0
    %p301 = por %p299, %p300
    %s303 = sadd.s32 %s302, 1
    %p306 = scmp.eq.s32.totalorder %s18, 7
    %p307 = scmp.ne.s32.totalorder %s302, %s304
    %p308 = scmp.eq.s32.totalorder %s18, 0
    %p309 = por %p307, %p308
    %p310 = scmp.ne.s32.totalorder %s302, %s304
    %p311 = scmp.eq.s32.totalorder %s23, 7
    %p312 = por %p310, %p311
    %p313 = scmp.ne.s32.totalorder %s304, %s305
    %p314 = scmp.eq.s32.totalorder %s23, 0
    %p315 = por %p313, %p314
    %p316 = scmp.ne.s32.totalorder %s304, %s305
    %p317 = scmp.eq.s32.totalorder %s24, 7
    %p318 = por %p316, %p317
    %p320 = scmp.ne.s32.totalorder %s305, %s319
    %p321 = scmp.eq.s32.totalorder %s24, 0
    %p322 = por %p320, %p321
    %s323 = ssub.s32 %s25, %s37
    %s324 = ssub.s32 %s26, %s33
    %s325 = sor.u32 %s323, %s324
    %p326 = scmp.eq.s32.totalorder %s325, 0
    %s328 = sadd.s32 %s327, 1
    %s329 = scalar_select %p326, %s327, %s328
    %p332 = pneg %p326
    %p333 = scmp.eq.s32.totalorder %s18, 7
    %p334 = por %p332, %p333
    %p335 = scmp.ne.s32.totalorder %s327, %s330
    %p336 = scmp.eq.s32.totalorder %s18, 0
    %p337 = por %p335, %p336
    %p338 = scmp.ne.s32.totalorder %s327, %s330
    %p339 = scmp.eq.s32.totalorder %s23, 7
    %p340 = por %p338, %p339
    %p341 = scmp.ne.s32.totalorder %s330, %s331
    %p342 = scmp.eq.s32.totalorder %s23, 0
    %p343 = por %p341, %p342
    %p344 = scmp.ne.s32.totalorder %s330, %s331
    %p345 = scmp.eq.s32.totalorder %s24, 7
    %p346 = por %p344, %p345
    %p348 = scmp.ne.s32.totalorder %s331, %s347
    %p349 = scmp.eq.s32.totalorder %s24, 0
    %p350 = por %p348, %p349
    %p351 = scmp.le.s32.totalorder 1, %s18
    %p352 = scmp.lt.s32.totalorder %s18, 9
    %p353 = pnand %p351, %p352
    %p354 = pneg %p353
    // Predicated region
    $region9: #{bottleneck_forward.1} parent=5 // pred_check
      _
    $region10: #{bottleneck_forward.1} parent=5 // pred_check_branch
      %356 = sbr.rel (%p353) target = $region12
    $region11: #{bottleneck_forward.1} parent=5 // pred_region
      %s357 = ssub.s32 %s18, 1
      // Predicated region
      $region13: #{bottleneck_forward.1} parent=11 // pred_check
        %p358 = pneg %p147
      $region14: #{bottleneck_forward.1} parent=11 // pred_check_branch
        %360 = sbr.rel (%p358) target = $region16
      $region15: #{bottleneck_forward.1} parent=11 // pred_region
        _
      $region16: #{bottleneck_forward.1} parent=11 // pred_fallthru
        _
      // Predicated region
      $region17: #{bottleneck_forward.1} parent=11 // pred_check
        %p361 = pneg %p168
      $region18: #{bottleneck_forward.1} parent=11 // pred_check_branch
        %363 = sbr.rel (%p361) target = $region20
      $region19: #{bottleneck_forward.1} parent=11 // pred_region
        _
      $region20: #{bottleneck_forward.1} parent=11 // pred_fallthru
        _
      // Predicated region
      $region21: #{bottleneck_forward.1} parent=11 // pred_check
        %p364 = pneg %p189
      $region22: #{bottleneck_forward.1} parent=11 // pred_check_branch
        %366 = sbr.rel (%p364) target = $region24
      $region23: #{bottleneck_forward.1} parent=11 // pred_region
        _
      $region24: #{bottleneck_forward.1} parent=11 // pred_fallthru
        _
      // Predicated region
      $region25: #{bottleneck_forward.1} parent=11 // pred_check
        %p367 = pneg %p210
      $region26: #{bottleneck_forward.1} parent=11 // pred_check_branch
        %369 = sbr.rel (%p367) target = $region28
      $region27: #{bottleneck_forward.1} parent=11 // pred_region
        _
      $region28: #{bottleneck_forward.1} parent=11 // pred_fallthru
        _
      // Predicated region
      $region29: #{bottleneck_forward.1} parent=11 // pred_check
        %p370 = pneg %p231
      $region30: #{bottleneck_forward.1} parent=11 // pred_check_branch
        %372 = sbr.rel (%p370) target = $region32
      $region31: #{bottleneck_forward.1} parent=11 // pred_region
        _
      $region32: #{bottleneck_forward.1} parent=11 // pred_fallthru
        _
      // Predicated region
      $region33: #{bottleneck_forward.1} parent=11 // pred_check
        %p373 = pneg %p252
      $region34: #{bottleneck_forward.1} parent=11 // pred_check_branch
        %375 = sbr.rel (%p373) target = $region36
      $region35: #{bottleneck_forward.1} parent=11 // pred_region
        _
      $region36: #{bottleneck_forward.1} parent=11 // pred_fallthru
        _
      // Predicated region
      $region37: #{bottleneck_forward.1} parent=11 // pred_check
        %p376 = pneg %p273
      $region38: #{bottleneck_forward.1} parent=11 // pred_check_branch
        %378 = sbr.rel (%p376) target = $region40
      $region39: #{bottleneck_forward.1} parent=11 // pred_region
        _
      $region40: #{bottleneck_forward.1} parent=11 // pred_fallthru
        _
      // Predicated region
      $region41: #{bottleneck_forward.1} parent=11 // pred_check
        %p379 = pneg %p294
      $region42: #{bottleneck_forward.1} parent=11 // pred_check_branch
        %381 = sbr.rel (%p379) target = $region44
      $region43: #{bottleneck_forward.1} parent=11 // pred_region
        _
      $region44: #{bottleneck_forward.1} parent=11 // pred_fallthru
        _
      // Predicated region
      $region45: #{bottleneck_forward.1} parent=11 // pred_check
        %p382 = pneg %p315
      $region46: #{bottleneck_forward.1} parent=11 // pred_check_branch
        %384 = sbr.rel (%p382) target = $region48
      $region47: #{bottleneck_forward.1} parent=11 // pred_region
        _
      $region48: #{bottleneck_forward.1} parent=11 // pred_fallthru
        _
    $region12: #{bottleneck_forward.1} parent=5 // pred_fallthru
      _
    %p385 = scmp.lt.s32.totalorder %s18, 8
    // Predicated region
    $region49: #{bottleneck_forward.1} parent=5 // pred_check
      %p386 = pneg %p385
    $region50: #{bottleneck_forward.1} parent=5 // pred_check_branch
      %388 = sbr.rel (%p386) target = $region52
    $region51: #{bottleneck_forward.1} parent=5 // pred_region
      // Predicated region
      $region53: #{bottleneck_forward.1} parent=51 // pred_check
        %p389 = pneg %p58
      $region54: #{bottleneck_forward.1} parent=51 // pred_check_branch
        %391 = sbr.rel (%p389) target = $region56
      $region55: #{bottleneck_forward.1} parent=51 // pred_region
        %s392 = ssub.s32 %s26, 1
        %p393 = scmp.gt.s32.totalorder %s392, 0
        %s394 = scalar_select %p393, %s392, 0
        %p395 = scmp.lt.s32.totalorder %s25, 1
        %s396 = scalar_select %p395, %s25, 1
        %p397 = scmp.lt.s32.totalorder %s394, 3
        %s398 = scalar_select %p397, %s394, 3
        %s399 = smul.addr %s398, 8
        %s400 = smul.addr %s396, 32
        %s401 = sadd.s32 %s399, %s400
        %s402 = smul.addr %s401, 4
        %s403 = scalar_lea.vmem %s0, %s402
        %s404 = ssub.s32 %s26, 1
        %p405 = scmp.gt.s32.totalorder %s404, 0
        %s406 = scalar_select %p405, %s404, 0
      $region56: #{bottleneck_forward.1} parent=51 // pred_fallthru
        _
      // Predicated region
      $region57: #{bottleneck_forward.1} parent=51 // pred_check
        %p407 = pneg %p86
      $region58: #{bottleneck_forward.1} parent=51 // pred_check_branch
        %409 = sbr.rel (%p407) target = $region60
      $region59: #{bottleneck_forward.1} parent=51 // pred_region
        %p410 = scmp.lt.s32.totalorder %s25, 1
        %s411 = scalar_select %p410, %s25, 1
        %p412 = scmp.lt.s32.totalorder %s26, 3
        %s413 = scalar_select %p412, %s26, 3
        %s414 = smul.addr %s413, 8
        %s415 = smul.addr %s411, 32
        %s416 = sadd.s32 %s414, %s415
        %s417 = smul.addr %s416, 4
        %s418 = scalar_lea.vmem %s1, %s417
      $region60: #{bottleneck_forward.1} parent=51 // pred_fallthru
        _
      // Predicated region
      $region61: #{bottleneck_forward.1} parent=51 // pred_check
        %p419 = pneg %p120
      $region62: #{bottleneck_forward.1} parent=51 // pred_check_branch
        %421 = sbr.rel (%p419) target = $region64
      $region63: #{bottleneck_forward.1} parent=51 // pred_region
        %s422 = sadd.s32 %s26, 1
        %p423 = scmp.lt.s32.totalorder %s422, 3
        %s424 = scalar_select %p423, %s422, 3
        %p425 = scmp.lt.s32.totalorder %s25, 1
        %s426 = scalar_select %p425, %s25, 1
        %p427 = scmp.lt.s32.totalorder %s424, 3
        %s428 = scalar_select %p427, %s424, 3
        %s429 = smul.addr %s428, 8
        %s430 = smul.addr %s426, 32
        %s431 = sadd.s32 %s429, %s430
        %s432 = smul.addr %s431, 4
        %s433 = scalar_lea.vmem %s2, %s432
        %s434 = sadd.s32 %s26, 1
        %p435 = scmp.lt.s32.totalorder %s434, 3
        %s436 = scalar_select %p435, %s434, 3
      $region64: #{bottleneck_forward.1} parent=51 // pred_fallthru
        _
    $region52: #{bottleneck_forward.1} parent=5 // pred_fallthru
      _
    %p437 = scmp.le.s32.totalorder 1, %s18
    %p438 = scmp.lt.s32.totalorder %s18, 9
    %p439 = pnand %p437, %p438
    %p440 = pneg %p439
    // Predicated region
    $region65: #{bottleneck_forward.1} parent=5 // pred_check
      _
    $region66: #{bottleneck_forward.1} parent=5 // pred_check_branch
      %442 = sbr.rel (%p439) target = $region68
    $region67: #{bottleneck_forward.1} parent=5 // pred_region
      %s443 = ssub.s32 %s18, 1
      %s444 = ssub.s32 %s28, 1
      %p445 = scmp.gt.s32.totalorder %s444, 0
      %s446 = scalar_select %p445, %s444, 0
      %p447 = scmp.lt.s32.totalorder %s27, 1
      %s448 = scalar_select %p447, %s27, 1
      %p449 = scmp.lt.s32.totalorder %s446, 3
      %s450 = scalar_select %p449, %s446, 3
      %s451 = smul.addr %s450, 8
      %s452 = smul.addr %s448, 32
      %s453 = sadd.s32 %s451, %s452
      %s454 = smul.addr %s453, 4
      %s455 = scalar_lea.vmem %s0, %s454
      %p456 = pneg %p64
      %p457 = pneg %p61
      %p458 = scmp.lt.s32.totalorder %s27, 1
      %s459 = scalar_select %p458, %s27, 1
      %p460 = scmp.lt.s32.totalorder %s28, 3
      %s461 = scalar_select %p460, %s28, 3
      %s462 = smul.addr %s461, 8
      %s463 = smul.addr %s459, 32
      %s464 = sadd.s32 %s462, %s463
      %s465 = smul.addr %s464, 4
      %s466 = scalar_lea.vmem %s1, %s465
      %p467 = pneg %p92
      %p468 = pneg %p89
      %s469 = sadd.s32 %s28, 1
      %p470 = scmp.lt.s32.totalorder %s469, 3
      %s471 = scalar_select %p470, %s469, 3
      %p472 = scmp.lt.s32.totalorder %s27, 1
      %s473 = scalar_select %p472, %s27, 1
      %p474 = scmp.lt.s32.totalorder %s471, 3
      %s475 = scalar_select %p474, %s471, 3
      %s476 = smul.addr %s475, 8
      %s477 = smul.addr %s473, 32
      %s478 = sadd.s32 %s476, %s477
      %s479 = smul.addr %s478, 4
      %s480 = scalar_lea.vmem %s2, %s479
      %p481 = pneg %p126
      %p482 = pneg %p123
      %p483 = pneg %p147
      %p484 = pneg %p144
      %p485 = pneg %p168
      %p486 = pneg %p165
      %p487 = pneg %p189
      %p488 = pneg %p186
      %p489 = pneg %p210
      %p490 = pneg %p207
      %p491 = pneg %p231
      %p492 = pneg %p228
      %p493 = pneg %p252
      %p494 = pneg %p249
      %p495 = pneg %p273
      %p496 = pneg %p270
      %p497 = pneg %p294
      %p498 = pneg %p291
      %p499 = pneg %p315
      %p500 = pneg %p312
      %p501 = pneg %p343
      %p502 = pneg %p340
      %p503 = scmp.lt.s32.totalorder %s27, 1
      %s504 = scalar_select %p503, %s27, 1
      %p505 = scmp.lt.s32.totalorder %s28, 3
      %s506 = scalar_select %p505, %s28, 3
      %s507 = smul.addr %s506, 8
      %s508 = smul.addr %s504, 32
      %s509 = sadd.s32 %s507, %s508
      %s510 = smul.addr %s509, 4
      %s511 = scalar_lea.vmem %s12, %s510
      %s512 = ssub.s32 %s28, 1
      %p513 = scmp.gt.s32.totalorder %s512, 0
      %s514 = scalar_select %p513, %s512, 0
      %p515 = scmp.lt.s32.totalorder %s27, 1
      %s516 = scalar_select %p515, %s27, 1
      %p517 = scmp.lt.s32.totalorder %s514, 3
      %s518 = scalar_select %p517, %s514, 3
      %s519 = smul.addr %s518, 8
      %s520 = smul.addr %s516, 32
      %s521 = sadd.s32 %s519, %s520
      %s522 = smul.addr %s521, 4
      %s523 = scalar_lea.vmem %s0, %s522
      %s524 = ssub.s32 %s28, 1
      %p525 = scmp.gt.s32.totalorder %s524, 0
      %s526 = scalar_select %p525, %s524, 0
      %p527 = scmp.lt.s32.totalorder %s27, 1
      %s528 = scalar_select %p527, %s27, 1
      %p529 = scmp.lt.s32.totalorder %s28, 3
      %s530 = scalar_select %p529, %s28, 3
      %s531 = smul.addr %s530, 8
      %s532 = smul.addr %s528, 32
      %s533 = sadd.s32 %s531, %s532
      %s534 = smul.addr %s533, 4
      %s535 = scalar_lea.vmem %s1, %s534
      %s536 = sadd.s32 %s28, 1
      %p537 = scmp.lt.s32.totalorder %s536, 3
      %s538 = scalar_select %p537, %s536, 3
      %p539 = scmp.lt.s32.totalorder %s27, 1
      %s540 = scalar_select %p539, %s27, 1
      %p541 = scmp.lt.s32.totalorder %s538, 3
      %s542 = scalar_select %p541, %s538, 3
      %s543 = smul.addr %s542, 8
      %s544 = smul.addr %s540, 32
      %s545 = sadd.s32 %s543, %s544
      %s546 = smul.addr %s545, 4
      %s547 = scalar_lea.vmem %s2, %s546
      %s548 = sadd.s32 %s28, 1
      %p549 = scmp.lt.s32.totalorder %s548, 3
      %s550 = scalar_select %p549, %s548, 3
      %p551 = scmp.lt.s32.totalorder %s27, 1
      %s552 = scalar_select %p551, %s27, 1
      %p553 = scmp.lt.s32.totalorder %s28, 3
      %s554 = scalar_select %p553, %s28, 3
      %s555 = smul.addr %s554, 8
      %s556 = smul.addr %s552, 32
      %s557 = sadd.s32 %s555, %s556
      %s558 = smul.addr %s557, 4
      %s559 = scalar_lea.vmem %s12, %s558
      %v561 = vld [vmem:[%s3] sm:$0xf]
      %v562 = vld [vmem:[%s3 + $0x4] sm:$0xf]
      %v563 = vld [vmem:[%s4] sm:$0x1]
      %v564 = vld [vmem:[%s5] sm:$0x1]
      %v565 = vld [vmem:[%s523] sm:$0xf]
      %v566 = vld [vmem:[%s523 + $0x4] sm:$0xf]
      %v567 = vld [vmem:[%s523 + $0x8] sm:$0xf]
      %v568 = vld [vmem:[%s523 + $0xc] sm:$0xf]
      %v569 = vld [vmem:[%s523 + $0x10] sm:$0xf]
      %v570 = vld [vmem:[%s523 + $0x14] sm:$0xf]
      %v571 = vld [vmem:[%s523 + $0x18] sm:$0xf]
      %v572 = vld [vmem:[%s523 + $0x1c] sm:$0xf]
      %v581 = vunpack.c.l.b16 %v565
      %v582 = vunpack.c.l.b16 %v566
      %v583 = vunpack.c.l.b16 %v567
      %v584 = vunpack.c.l.b16 %v568
      %v585 = vunpack.c.l.b16 %v569
      %v586 = vunpack.c.l.b16 %v570
      %v587 = vunpack.c.l.b16 %v571
      %v588 = vunpack.c.l.b16 %v572
      %v589 = vpack.c.b16 %v582, %v581
      %v590 = vpack.c.b16 %v584, %v583
      %v591 = vpack.c.b16 %v586, %v585
      %v592 = vpack.c.b16 %v588, %v587
      %v595 = vunpack.c.l.b16 %v561
      %v596 = vunpack.c.l.b16 %v562
      %v597 = vpack.c.b16 %v596, %v595
      %vm599 = vcmask 130048
      %v601 = vsel %vm599, %v589, 0
      %v604 = vsel %vm599, %v590, 0
      %v607 = vsel %vm599, %v591, 0
      %v610 = vsel %vm599, %v592, 0
      %612 = vmatpush.bf16.msra.mxu0 0
      %613 = vmatpush.bf16.msra.mxu0 0
      %614 = vmatpush.bf16.msra.mxu0 0
      %615 = vmatpush.bf16.msra.mxu0 0
      %616 = vmatpush.bf16.msra.mxu0 0
      %617 = vmatpush.bf16.msra.mxu0 0
      %618 = vmatpush.bf16.msra.mxu0 0
      %619 = vmatpush.bf16.msra.mxu0 %v597
      %620 = vmatmul.bf16.gmra.mxu0 %v601
      %v621 = vpop.f32.mrf.mxu0
      %v622 = vadd.f32 0.0, %v621
      %v623 = vpop.f32.mrf.mxu0
      %v624 = vadd.f32 0.0, %v623
      %625 = vmatmul.bf16.gmra.mxu0 %v604
      %v626 = vpop.f32.mrf.mxu0
      %v627 = vadd.f32 0.0, %v626
      %v628 = vpop.f32.mrf.mxu0
      %v629 = vadd.f32 0.0, %v628
      %630 = vmatmul.bf16.gmra.mxu0 %v607
      %v631 = vpop.f32.mrf.mxu0
      %v632 = vadd.f32 0.0, %v631
      %v633 = vpop.f32.mrf.mxu0
      %v634 = vadd.f32 0.0, %v633
      %635 = vmatmul.bf16.gmra.mxu0 %v610
      %v636 = vpop.f32.mrf.mxu0
      %v637 = vadd.f32 0.0, %v636
      %v638 = vpop.f32.mrf.mxu0
      %v639 = vadd.f32 0.0, %v638
      %640 = vdwg.mxu0
      %v642 = vperm.slane %v563, 0
      %v644 = vmul.f32 %v622, %v642
      %v645 = vmul.f32 %v624, %v642
      %v646 = vmul.f32 %v627, %v642
      %v647 = vmul.f32 %v629, %v642
      %v648 = vmul.f32 %v632, %v642
      %v649 = vmul.f32 %v634, %v642
      %v650 = vmul.f32 %v637, %v642
      %v651 = vmul.f32 %v639, %v642
      %v653 = vperm.slane %v564, 0
      %v655 = vadd.f32 %v644, %v653
      %v656 = vadd.f32 %v645, %v653
      %v657 = vadd.f32 %v646, %v653
      %v658 = vadd.f32 %v647, %v653
      %v659 = vadd.f32 %v648, %v653
      %v660 = vadd.f32 %v649, %v653
      %v661 = vadd.f32 %v650, %v653
      %v662 = vadd.f32 %v651, %v653
      %v663 = vmax.f32 %v655, 0.0
      %v664 = vmax.f32 %v656, 0.0
      %v665 = vmax.f32 %v657, 0.0
      %v666 = vmax.f32 %v658, 0.0
      %v667 = vmax.f32 %v659, 0.0
      %v668 = vmax.f32 %v660, 0.0
      %v669 = vmax.f32 %v661, 0.0
      %v670 = vmax.f32 %v662, 0.0
      %p671 = scmp.gt.s32.totalorder %s28, 0
      %s672 = scalar_select %p671, 1.0, 0.0
      %v673 = vstv %s672
      %v674 = vmul.f32 %v663, %v673
      %v675 = vmul.f32 %v664, %v673
      %v676 = vmul.f32 %v665, %v673
      %v677 = vmul.f32 %v666, %v673
      %v678 = vmul.f32 %v667, %v673
      %v679 = vmul.f32 %v668, %v673
      %v680 = vmul.f32 %v669, %v673
      %v681 = vmul.f32 %v670, %v673
      %v682 = vld [vmem:[%s535] sm:$0xf]
      %v683 = vld [vmem:[%s535 + $0x4] sm:$0xf]
      %v684 = vld [vmem:[%s535 + $0x8] sm:$0xf]
      %v685 = vld [vmem:[%s535 + $0xc] sm:$0xf]
      %v686 = vld [vmem:[%s535 + $0x10] sm:$0xf]
      %v687 = vld [vmem:[%s535 + $0x14] sm:$0xf]
      %v688 = vld [vmem:[%s535 + $0x18] sm:$0xf]
      %v689 = vld [vmem:[%s535 + $0x1c] sm:$0xf]
      %v698 = vunpack.c.l.b16 %v682
      %v699 = vunpack.c.l.b16 %v683
      %v700 = vunpack.c.l.b16 %v684
      %v701 = vunpack.c.l.b16 %v685
      %v702 = vunpack.c.l.b16 %v686
      %v703 = vunpack.c.l.b16 %v687
      %v704 = vunpack.c.l.b16 %v688
      %v705 = vunpack.c.l.b16 %v689
      %v706 = vpack.c.b16 %v699, %v698
      %v707 = vpack.c.b16 %v701, %v700
      %v708 = vpack.c.b16 %v703, %v702
      %v709 = vpack.c.b16 %v705, %v704
      %v711 = vsel %vm599, %v706, 0
      %v714 = vsel %vm599, %v707, 0
      %v717 = vsel %vm599, %v708, 0
      %v720 = vsel %vm599, %v709, 0
      %722 = vmatpush.bf16.msra.mxu0 0
      %723 = vmatpush.bf16.msra.mxu0 0
      %724 = vmatpush.bf16.msra.mxu0 0
      %725 = vmatpush.bf16.msra.mxu0 0
      %726 = vmatpush.bf16.msra.mxu0 0
      %727 = vmatpush.bf16.msra.mxu0 0
      %728 = vmatpush.bf16.msra.mxu0 0
      %729 = vmatpush.bf16.msra.mxu0 %v597
      %730 = vmatmul.bf16.gmra.mxu0 %v711
      %v731 = vpop.f32.mrf.mxu0
      %v732 = vadd.f32 0.0, %v731
      %v733 = vpop.f32.mrf.mxu0
      %v734 = vadd.f32 0.0, %v733
      %735 = vmatmul.bf16.gmra.mxu0 %v714
      %v736 = vpop.f32.mrf.mxu0
      %v737 = vadd.f32 0.0, %v736
      %v738 = vpop.f32.mrf.mxu0
      %v739 = vadd.f32 0.0, %v738
      %740 = vmatmul.bf16.gmra.mxu0 %v717
      %v741 = vpop.f32.mrf.mxu0
      %v742 = vadd.f32 0.0, %v741
      %v743 = vpop.f32.mrf.mxu0
      %v744 = vadd.f32 0.0, %v743
      %745 = vmatmul.bf16.gmra.mxu0 %v720
      %v746 = vpop.f32.mrf.mxu0
      %v747 = vadd.f32 0.0, %v746
      %v748 = vpop.f32.mrf.mxu0
      %v749 = vadd.f32 0.0, %v748
      %750 = vdwg.mxu0
      %v751 = vmul.f32 %v732, %v642
      %v752 = vmul.f32 %v734, %v642
      %v753 = vmul.f32 %v737, %v642
      %v754 = vmul.f32 %v739, %v642
      %v755 = vmul.f32 %v742, %v642
      %v756 = vmul.f32 %v744, %v642
      %v757 = vmul.f32 %v747, %v642
      %v758 = vmul.f32 %v749, %v642
      %v759 = vadd.f32 %v751, %v653
      %v760 = vadd.f32 %v752, %v653
      %v761 = vadd.f32 %v753, %v653
      %v762 = vadd.f32 %v754, %v653
      %v763 = vadd.f32 %v755, %v653
      %v764 = vadd.f32 %v756, %v653
      %v765 = vadd.f32 %v757, %v653
      %v766 = vadd.f32 %v758, %v653
      %v767 = vmax.f32 %v759, 0.0
      %v768 = vmax.f32 %v760, 0.0
      %v769 = vmax.f32 %v761, 0.0
      %v770 = vmax.f32 %v762, 0.0
      %v771 = vmax.f32 %v763, 0.0
      %v772 = vmax.f32 %v764, 0.0
      %v773 = vmax.f32 %v765, 0.0
      %v774 = vmax.f32 %v766, 0.0
      %v775 = vld [vmem:[%s547] sm:$0xf]
      %v776 = vld [vmem:[%s547 + $0x4] sm:$0xf]
      %v777 = vld [vmem:[%s547 + $0x8] sm:$0xf]
      %v778 = vld [vmem:[%s547 + $0xc] sm:$0xf]
      %v779 = vld [vmem:[%s547 + $0x10] sm:$0xf]
      %v780 = vld [vmem:[%s547 + $0x14] sm:$0xf]
      %v781 = vld [vmem:[%s547 + $0x18] sm:$0xf]
      %v782 = vld [vmem:[%s547 + $0x1c] sm:$0xf]
      %v791 = vunpack.c.l.b16 %v775
      %v792 = vunpack.c.l.b16 %v776
      %v793 = vunpack.c.l.b16 %v777
      %v794 = vunpack.c.l.b16 %v778
      %v795 = vunpack.c.l.b16 %v779
      %v796 = vunpack.c.l.b16 %v780
      %v797 = vunpack.c.l.b16 %v781
      %v798 = vunpack.c.l.b16 %v782
      %v799 = vpack.c.b16 %v792, %v791
      %v800 = vpack.c.b16 %v794, %v793
      %v801 = vpack.c.b16 %v796, %v795
      %v802 = vpack.c.b16 %v798, %v797
      %v804 = vsel %vm599, %v799, 0
      %v807 = vsel %vm599, %v800, 0
      %v810 = vsel %vm599, %v801, 0
      %v813 = vsel %vm599, %v802, 0
      %815 = vmatpush.bf16.msra.mxu0 0
      %816 = vmatpush.bf16.msra.mxu0 0
      %817 = vmatpush.bf16.msra.mxu0 0
      %818 = vmatpush.bf16.msra.mxu0 0
      %819 = vmatpush.bf16.msra.mxu0 0
      %820 = vmatpush.bf16.msra.mxu0 0
      %821 = vmatpush.bf16.msra.mxu0 0
      %822 = vmatpush.bf16.msra.mxu0 %v597
      %823 = vmatmul.bf16.gmra.mxu0 %v804
      %v824 = vpop.f32.mrf.mxu0
      %v825 = vadd.f32 0.0, %v824
      %v826 = vpop.f32.mrf.mxu0
      %v827 = vadd.f32 0.0, %v826
      %828 = vmatmul.bf16.gmra.mxu0 %v807
      %v829 = vpop.f32.mrf.mxu0
      %v830 = vadd.f32 0.0, %v829
      %v831 = vpop.f32.mrf.mxu0
      %v832 = vadd.f32 0.0, %v831
      %833 = vmatmul.bf16.gmra.mxu0 %v810
      %v834 = vpop.f32.mrf.mxu0
      %v835 = vadd.f32 0.0, %v834
      %v836 = vpop.f32.mrf.mxu0
      %v837 = vadd.f32 0.0, %v836
      %838 = vmatmul.bf16.gmra.mxu0 %v813
      %v839 = vpop.f32.mrf.mxu0
      %v840 = vadd.f32 0.0, %v839
      %v841 = vpop.f32.mrf.mxu0
      %v842 = vadd.f32 0.0, %v841
      %843 = vdwg.mxu0
      %v844 = vmul.f32 %v825, %v642
      %v845 = vmul.f32 %v827, %v642
      %v846 = vmul.f32 %v830, %v642
      %v847 = vmul.f32 %v832, %v642
      %v848 = vmul.f32 %v835, %v642
      %v849 = vmul.f32 %v837, %v642
      %v850 = vmul.f32 %v840, %v642
      %v851 = vmul.f32 %v842, %v642
      %v852 = vadd.f32 %v844, %v653
      %v853 = vadd.f32 %v845, %v653
      %v854 = vadd.f32 %v846, %v653
      %v855 = vadd.f32 %v847, %v653
      %v856 = vadd.f32 %v848, %v653
      %v857 = vadd.f32 %v849, %v653
      %v858 = vadd.f32 %v850, %v653
      %v859 = vadd.f32 %v851, %v653
      %v860 = vmax.f32 %v852, 0.0
      %v861 = vmax.f32 %v853, 0.0
      %v862 = vmax.f32 %v854, 0.0
      %v863 = vmax.f32 %v855, 0.0
      %v864 = vmax.f32 %v856, 0.0
      %v865 = vmax.f32 %v857, 0.0
      %v866 = vmax.f32 %v858, 0.0
      %v867 = vmax.f32 %v859, 0.0
      %p868 = scmp.lt.s32.totalorder %s28, 3
      %s869 = scalar_select %p868, 1.0, 0.0
      %v870 = vstv %s869
      %v871 = vmul.f32 %v860, %v870
      %v872 = vmul.f32 %v861, %v870
      %v873 = vmul.f32 %v862, %v870
      %v874 = vmul.f32 %v863, %v870
      %v875 = vmul.f32 %v864, %v870
      %v876 = vmul.f32 %v865, %v870
      %v877 = vmul.f32 %v866, %v870
      %v878 = vmul.f32 %v867, %v870
      %887 = vrot.lane.b32.xlu0 %v767, 4
      %v888 = vpop.permute.xlu0 %887
      %889 = vrot.lane.b32.xlu0 %v768, 4
      %v890 = vpop.permute.xlu0 %889
      %891 = vrot.lane.b32.xlu0 %v769, 4
      %v892 = vpop.permute.xlu0 %891
      %893 = vrot.lane.b32.xlu0 %v770, 4
      %v894 = vpop.permute.xlu0 %893
      %895 = vrot.lane.b32.xlu0 %v771, 4
      %v896 = vpop.permute.xlu0 %895
      %897 = vrot.lane.b32.xlu0 %v772, 4
      %v898 = vpop.permute.xlu0 %897
      %899 = vrot.lane.b32.xlu0 %v773, 4
      %v900 = vpop.permute.xlu0 %899
      %901 = vrot.lane.b32.xlu0 %v774, 4
      %v902 = vpop.permute.xlu0 %901
      %919 = vrot.lane.b32.xlu0 %v871, 8
      %v920 = vpop.permute.xlu0 %919
      %921 = vrot.lane.b32.xlu0 %v872, 8
      %v922 = vpop.permute.xlu0 %921
      %923 = vrot.lane.b32.xlu0 %v873, 8
      %v924 = vpop.permute.xlu0 %923
      %925 = vrot.lane.b32.xlu0 %v874, 8
      %v926 = vpop.permute.xlu0 %925
      %927 = vrot.lane.b32.xlu0 %v875, 8
      %v928 = vpop.permute.xlu0 %927
      %929 = vrot.lane.b32.xlu0 %v876, 8
      %v930 = vpop.permute.xlu0 %929
      %931 = vrot.lane.b32.xlu0 %v877, 8
      %v932 = vpop.permute.xlu0 %931
      %933 = vrot.lane.b32.xlu0 %v878, 8
      %v934 = vpop.permute.xlu0 %933
      %vm943 = vcmask 31744
      %v944 = vsel %vm943, %v674, %v888
      %v945 = vsel %vm943, %v675, %v890
      %v946 = vsel %vm943, %v676, %v892
      %v947 = vsel %vm943, %v677, %v894
      %v948 = vsel %vm943, %v678, %v896
      %v949 = vsel %vm943, %v679, %v898
      %v950 = vsel %vm943, %v680, %v900
      %v951 = vsel %vm943, %v681, %v902
      %vm952 = vcmask 64512
      %v953 = vsel %vm952, %v944, %v920
      %v954 = vsel %vm952, %v945, %v922
      %v955 = vsel %vm952, %v946, %v924
      %v956 = vsel %vm952, %v947, %v926
      %v957 = vsel %vm952, %v948, %v928
      %v958 = vsel %vm952, %v949, %v930
      %v959 = vsel %vm952, %v950, %v932
      %v960 = vsel %vm952, %v951, %v934
      %vm961 = vcmask 97280
      %962 = vst.msk [vmem:[#allocation2] sm:$0xff] %vm961, 0.0
      %vm963 = vcmask 91136
      %964 = vst.msk [vmem:[#allocation2 + $0x8] sm:$0x3] %vm963, 0.0
      %s965 = scalar_lea.vmem [#allocation2], 144
      %966 = vst.msk [vmem:[%s965] sm:$0xff] %vm961, 0.0
      %967 = vst.msk [vmem:[%s965 + $0x8] sm:$0x3] %vm963, 0.0
      %s968 = scalar_lea.vmem [#allocation2], 16
      %vm969 = vcmask 90112
      %970 = vst.msk [vmem:[%s968] sm:$0x1] %vm969, 0.0
      %971 = vst.msk [vmem:[%s968 + $0x10] sm:$0x1] %vm969, 0.0
      %972 = vst.msk [vmem:[%s968 + $0x20] sm:$0x1] %vm969, 0.0
      %973 = vst.msk [vmem:[%s968 + $0x30] sm:$0x1] %vm969, 0.0
      %974 = vst.msk [vmem:[%s968 + $0x40] sm:$0x1] %vm969, 0.0
      %975 = vst.msk [vmem:[%s968 + $0x50] sm:$0x1] %vm969, 0.0
      %976 = vst.msk [vmem:[%s968 + $0x60] sm:$0x1] %vm969, 0.0
      %977 = vst.msk [vmem:[%s968 + $0x70] sm:$0x1] %vm969, 0.0
      %978 = vst.msk [vmem:[%s968 + $0x9] sm:$0x1] %vm969, 0.0
      %979 = vst.msk [vmem:[%s968 + $0x19] sm:$0x1] %vm969, 0.0
      %980 = vst.msk [vmem:[%s968 + $0x29] sm:$0x1] %vm969, 0.0
      %981 = vst.msk [vmem:[%s968 + $0x39] sm:$0x1] %vm969, 0.0
      %982 = vst.msk [vmem:[%s968 + $0x49] sm:$0x1] %vm969, 0.0
      %983 = vst.msk [vmem:[%s968 + $0x59] sm:$0x1] %vm969, 0.0
      %984 = vst.msk [vmem:[%s968 + $0x69] sm:$0x1] %vm969, 0.0
      %985 = vst.msk [vmem:[%s968 + $0x79] sm:$0x1] %vm969, 0.0
      %986 = vst.msk [vmem:[%s968 + $0x1] sm:$0xff] %vm961, %v953
      %987 = vst.msk [vmem:[%s968 + $0x11] sm:$0xff] %vm961, %v954
      %988 = vst.msk [vmem:[%s968 + $0x21] sm:$0xff] %vm961, %v955
      %989 = vst.msk [vmem:[%s968 + $0x31] sm:$0xff] %vm961, %v956
      %990 = vst.msk [vmem:[%s968 + $0x41] sm:$0xff] %vm961, %v957
      %991 = vst.msk [vmem:[%s968 + $0x51] sm:$0xff] %vm961, %v958
      %992 = vst.msk [vmem:[%s968 + $0x61] sm:$0xff] %vm961, %v959
      %993 = vst.msk [vmem:[%s968 + $0x71] sm:$0xff] %vm961, %v960
      %v994 = vld [vmem:[#allocation2] sm:$0xff]
      %v995 = vld [vmem:[#allocation2 + $0x8] sm:$0x3]
      %v996 = vld [vmem:[#allocation2 + $0x10] sm:$0xff]
      %v997 = vld [vmem:[#allocation2 + $0x18] sm:$0x3]
      %v998 = vld [vmem:[#allocation2 + $0x20] sm:$0xff]
      %v999 = vld [vmem:[#allocation2 + $0x28] sm:$0x3]
      %v1000 = vld [vmem:[#allocation2 + $0x30] sm:$0xff]
      %v1001 = vld [vmem:[#allocation2 + $0x38] sm:$0x3]
      %v1002 = vld [vmem:[#allocation2 + $0x40] sm:$0xff]
      %v1003 = vld [vmem:[#allocation2 + $0x48] sm:$0x3]
      %v1004 = vld [vmem:[#allocation2 + $0x50] sm:$0xff]
      %v1005 = vld [vmem:[#allocation2 + $0x58] sm:$0x3]
      %v1006 = vld [vmem:[#allocation2 + $0x60] sm:$0xff]
      %v1007 = vld [vmem:[#allocation2 + $0x68] sm:$0x3]
      %v1008 = vld [vmem:[#allocation2 + $0x70] sm:$0xff]
      %v1009 = vld [vmem:[#allocation2 + $0x78] sm:$0x3]
      %v1010 = vld [vmem:[#allocation2 + $0x80] sm:$0xff]
      %v1011 = vld [vmem:[#allocation2 + $0x88] sm:$0x3]
      %v1012 = vld [vmem:[#allocation2 + $0x90] sm:$0xff]
      %v1013 = vld [vmem:[#allocation2 + $0x98] sm:$0x3]
      %v1014 = vpack.c.bf16 %v994, %v994
      %v1015 = vpack.c.bf16 %v995, %v995
      %v1016 = vpack.c.bf16 %v996, %v996
      %v1017 = vpack.c.bf16 %v997, %v997
      %v1018 = vpack.c.bf16 %v998, %v998
      %v1019 = vpack.c.bf16 %v999, %v999
      %v1020 = vpack.c.bf16 %v1000, %v1000
      %v1021 = vpack.c.bf16 %v1001, %v1001
      %v1022 = vpack.c.bf16 %v1002, %v1002
      %v1023 = vpack.c.bf16 %v1003, %v1003
      %v1024 = vpack.c.bf16 %v1004, %v1004
      %v1025 = vpack.c.bf16 %v1005, %v1005
      %v1026 = vpack.c.bf16 %v1006, %v1006
      %v1027 = vpack.c.bf16 %v1007, %v1007
      %v1028 = vpack.c.bf16 %v1008, %v1008
      %v1029 = vpack.c.bf16 %v1009, %v1009
      %v1030 = vpack.c.bf16 %v1010, %v1010
      %v1031 = vpack.c.bf16 %v1011, %v1011
      %v1032 = vpack.c.bf16 %v1012, %v1012
      %v1033 = vpack.c.bf16 %v1013, %v1013
      %v1034 = vld [vmem:[%s6] sm:$0xf]
      %v1035 = vld [vmem:[%s6 + $0x4] sm:$0x3]
      %vm1036 = vsmask.f32 3328
      %vm1037 = vsmask.f32 7440
      %vm1038 = vmor %vm1036, %vm1037
      %v1040 = vshrl.u32 %v1014, 16
      %v1042 = vrot.slane %v1040, 4
      %v1043 = vshll.u32 %v1014, 16
      %v1045 = vrot.slane %v1043, 5
      %v1046 = vor.u32 %v1042, %v1045
      %v1047 = vrot.slane %v1046, 4
      %v1049 = vshll.u32 %v1015, 16
      %v1051 = vrot.slane %v1049, 5
      %v1052 = vsel %vm1038, %v1047, %v1051
      %v1054 = vshrl.u32 %v1016, 16
      %v1056 = vrot.slane %v1054, 4
      %v1057 = vshll.u32 %v1016, 16
      %v1059 = vrot.slane %v1057, 5
      %v1060 = vor.u32 %v1056, %v1059
      %v1061 = vrot.slane %v1060, 4
      %v1063 = vshll.u32 %v1017, 16
      %v1065 = vrot.slane %v1063, 5
      %v1066 = vsel %vm1038, %v1061, %v1065
      %v1068 = vshrl.u32 %v1018, 16
      %v1070 = vrot.slane %v1068, 4
      %v1071 = vshll.u32 %v1018, 16
      %v1073 = vrot.slane %v1071, 5
      %v1074 = vor.u32 %v1070, %v1073
      %v1075 = vrot.slane %v1074, 4
      %v1077 = vshll.u32 %v1019, 16
      %v1079 = vrot.slane %v1077, 5
      %v1080 = vsel %vm1038, %v1075, %v1079
      %v1082 = vshrl.u32 %v1020, 16
      %v1084 = vrot.slane %v1082, 4
      %v1085 = vshll.u32 %v1020, 16
      %v1087 = vrot.slane %v1085, 5
      %v1088 = vor.u32 %v1084, %v1087
      %v1089 = vrot.slane %v1088, 4
      %v1091 = vshll.u32 %v1021, 16
      %v1093 = vrot.slane %v1091, 5
      %v1094 = vsel %vm1038, %v1089, %v1093
      %v1096 = vshrl.u32 %v1022, 16
      %v1098 = vrot.slane %v1096, 4
      %v1099 = vshll.u32 %v1022, 16
      %v1101 = vrot.slane %v1099, 5
      %v1102 = vor.u32 %v1098, %v1101
      %v1103 = vrot.slane %v1102, 4
      %v1105 = vshll.u32 %v1023, 16
      %v1107 = vrot.slane %v1105, 5
      %v1108 = vsel %vm1038, %v1103, %v1107
      %v1110 = vshrl.u32 %v1024, 16
      %v1112 = vrot.slane %v1110, 4
      %v1113 = vshll.u32 %v1024, 16
      %v1115 = vrot.slane %v1113, 5
      %v1116 = vor.u32 %v1112, %v1115
      %v1117 = vrot.slane %v1116, 4
      %v1119 = vshll.u32 %v1025, 16
      %v1121 = vrot.slane %v1119, 5
      %v1122 = vsel %vm1038, %v1117, %v1121
      %v1124 = vshrl.u32 %v1026, 16
      %v1126 = vrot.slane %v1124, 4
      %v1127 = vshll.u32 %v1026, 16
      %v1129 = vrot.slane %v1127, 5
      %v1130 = vor.u32 %v1126, %v1129
      %v1131 = vrot.slane %v1130, 4
      %v1133 = vshll.u32 %v1027, 16
      %v1135 = vrot.slane %v1133, 5
      %v1136 = vsel %vm1038, %v1131, %v1135
      %v1138 = vshrl.u32 %v1028, 16
      %v1140 = vrot.slane %v1138, 4
      %v1141 = vshll.u32 %v1028, 16
      %v1143 = vrot.slane %v1141, 5
      %v1144 = vor.u32 %v1140, %v1143
      %v1145 = vrot.slane %v1144, 4
      %v1147 = vshll.u32 %v1029, 16
      %v1149 = vrot.slane %v1147, 5
      %v1150 = vsel %vm1038, %v1145, %v1149
      %s1151 = scalar_lea.vmem %s6, 8
      %v1152 = vld [vmem:[%s1151] sm:$0xf]
      %v1153 = vld [vmem:[%s1151 + $0x4] sm:$0x3]
      %v1154 = vunpack.c.l.b16 %v1052
      %v1155 = vunpack.c.l.b16 %v1066
      %v1156 = vunpack.c.l.b16 %v1080
      %v1157 = vunpack.c.l.b16 %v1094
      %v1158 = vunpack.c.l.b16 %v1108
      %v1159 = vunpack.c.l.b16 %v1122
      %v1160 = vunpack.c.l.b16 %v1136
      %v1161 = vunpack.c.l.b16 %v1150
      %v1162 = vpack.c.b16 %v1155, %v1154
      %v1163 = vpack.c.b16 %v1157, %v1156
      %v1164 = vpack.c.b16 %v1159, %v1158
      %v1165 = vpack.c.b16 %v1161, %v1160
      %v1168 = vunpack.c.l.b16 %v1152
      %v1169 = vunpack.c.l.b16 %v1153
      %v1170 = vpack.c.b16 %v1169, %v1168
      %v1172 = vsel %vm961, %v1162, 0
      %v1175 = vsel %vm961, %v1163, 0
      %v1178 = vsel %vm961, %v1164, 0
      %v1181 = vsel %vm961, %v1165, 0
      %vm1183 = vcmask 1045504
      %v1185 = vsel %vm1183, %v1170, 0
      %1187 = vmatpush.bf16.msra.mxu0 0
      %1188 = vmatpush.bf16.msra.mxu0 0
      %1189 = vmatpush.bf16.msra.mxu0 0
      %1190 = vmatpush.bf16.msra.mxu0 0
      %1191 = vmatpush.bf16.msra.mxu0 0
      %1192 = vmatpush.bf16.msra.mxu0 0
      %1193 = vmatpush.bf16.msra.mxu0 0
      %1194 = vmatpush.bf16.msra.mxu0 %v1185
      %1195 = vmatmul.bf16.gmra.mxu0 %v1172
      %v1196 = vpop.f32.mrf.mxu0
      %v1197 = vadd.f32 0.0, %v1196
      %v1198 = vpop.f32.mrf.mxu0
      %v1199 = vadd.f32 0.0, %v1198
      %1200 = vmatmul.bf16.gmra.mxu0 %v1175
      %v1201 = vpop.f32.mrf.mxu0
      %v1202 = vadd.f32 0.0, %v1201
      %v1203 = vpop.f32.mrf.mxu0
      %v1204 = vadd.f32 0.0, %v1203
      %1205 = vmatmul.bf16.gmra.mxu0 %v1178
      %v1206 = vpop.f32.mrf.mxu0
      %v1207 = vadd.f32 0.0, %v1206
      %v1208 = vpop.f32.mrf.mxu0
      %v1209 = vadd.f32 0.0, %v1208
      %1210 = vmatmul.bf16.gmra.mxu0 %v1181
      %v1211 = vpop.f32.mrf.mxu0
      %v1212 = vadd.f32 0.0, %v1211
      %v1213 = vpop.f32.mrf.mxu0
      %v1214 = vadd.f32 0.0, %v1213
      %1215 = vdwg.mxu0
      %v1224 = vunpack.c.l.b16 %v1014
      %v1225 = vunpack.c.l.b16 %v1016
      %v1226 = vunpack.c.l.b16 %v1018
      %v1227 = vunpack.c.l.b16 %v1020
      %v1228 = vunpack.c.l.b16 %v1022
      %v1229 = vunpack.c.l.b16 %v1024
      %v1230 = vunpack.c.l.b16 %v1026
      %v1231 = vunpack.c.l.b16 %v1028
      %v1232 = vpack.c.b16 %v1225, %v1224
      %v1233 = vpack.c.b16 %v1227, %v1226
      %v1234 = vpack.c.b16 %v1229, %v1228
      %v1235 = vpack.c.b16 %v1231, %v1230
      %v1238 = vunpack.c.l.b16 %v1034
      %v1239 = vunpack.c.l.b16 %v1035
      %v1240 = vpack.c.b16 %v1239, %v1238
      %v1242 = vsel %vm961, %v1232, 0
      %v1245 = vsel %vm961, %v1233, 0
      %v1248 = vsel %vm961, %v1234, 0
      %v1251 = vsel %vm961, %v1235, 0
      %v1254 = vsel %vm1183, %v1240, 0
      %1256 = vmatpush.bf16.msra.mxu0 0
      %1257 = vmatpush.bf16.msra.mxu0 0
      %1258 = vmatpush.bf16.msra.mxu0 0
      %1259 = vmatpush.bf16.msra.mxu0 0
      %1260 = vmatpush.bf16.msra.mxu0 0
      %1261 = vmatpush.bf16.msra.mxu0 0
      %1262 = vmatpush.bf16.msra.mxu0 0
      %1263 = vmatpush.bf16.msra.mxu0 %v1254
      %1264 = vmatmul.bf16.gmra.mxu0 %v1242
      %v1265 = vpop.f32.mrf.mxu0
      %v1266 = vadd.f32 %v1197, %v1265
      %v1267 = vpop.f32.mrf.mxu0
      %v1268 = vadd.f32 %v1199, %v1267
      %1269 = vmatmul.bf16.gmra.mxu0 %v1245
      %v1270 = vpop.f32.mrf.mxu0
      %v1271 = vadd.f32 %v1202, %v1270
      %v1272 = vpop.f32.mrf.mxu0
      %v1273 = vadd.f32 %v1204, %v1272
      %1274 = vmatmul.bf16.gmra.mxu0 %v1248
      %v1275 = vpop.f32.mrf.mxu0
      %v1276 = vadd.f32 %v1207, %v1275
      %v1277 = vpop.f32.mrf.mxu0
      %v1278 = vadd.f32 %v1209, %v1277
      %1279 = vmatmul.bf16.gmra.mxu0 %v1251
      %v1280 = vpop.f32.mrf.mxu0
      %v1281 = vadd.f32 %v1212, %v1280
      %v1282 = vpop.f32.mrf.mxu0
      %v1283 = vadd.f32 %v1214, %v1282
      %1284 = vdwg.mxu0
      %vm1293 = vcmask 1042432
      %vm1294 = vcmask 1046532
      %vm1295 = vmor %vm1293, %vm1294
      %v1296 = vrot.slane %v1014, 5
      %v1297 = vrot.slane %v1296, 4
      %v1298 = vrot.slane %v1015, 5
      %v1299 = vsel %vm1295, %v1297, %v1298
      %v1300 = vrot.slane %v1016, 5
      %v1301 = vrot.slane %v1300, 4
      %v1302 = vrot.slane %v1017, 5
      %v1303 = vsel %vm1295, %v1301, %v1302
      %v1304 = vrot.slane %v1018, 5
      %v1305 = vrot.slane %v1304, 4
      %v1306 = vrot.slane %v1019, 5
      %v1307 = vsel %vm1295, %v1305, %v1306
      %v1308 = vrot.slane %v1020, 5
      %v1309 = vrot.slane %v1308, 4
      %v1310 = vrot.slane %v1021, 5
      %v1311 = vsel %vm1295, %v1309, %v1310
      %v1312 = vrot.slane %v1022, 5
      %v1313 = vrot.slane %v1312, 4
      %v1314 = vrot.slane %v1023, 5
      %v1315 = vsel %vm1295, %v1313, %v1314
      %v1316 = vrot.slane %v1024, 5
      %v1317 = vrot.slane %v1316, 4
      %v1318 = vrot.slane %v1025, 5
      %v1319 = vsel %vm1295, %v1317, %v1318
      %v1320 = vrot.slane %v1026, 5
      %v1321 = vrot.slane %v1320, 4
      %v1322 = vrot.slane %v1027, 5
      %v1323 = vsel %vm1295, %v1321, %v1322
      %v1324 = vrot.slane %v1028, 5
      %v1325 = vrot.slane %v1324, 4
      %v1326 = vrot.slane %v1029, 5
      %v1327 = vsel %vm1295, %v1325, %v1326
      %s1328 = scalar_lea.vmem %s6, 16
      %v1329 = vld [vmem:[%s1328] sm:$0xf]
      %v1330 = vld [vmem:[%s1328 + $0x4] sm:$0x3]
      %v1331 = vunpack.c.l.b16 %v1299
      %v1332 = vunpack.c.l.b16 %v1303
      %v1333 = vunpack.c.l.b16 %v1307
      %v1334 = vunpack.c.l.b16 %v1311
      %v1335 = vunpack.c.l.b16 %v1315
      %v1336 = vunpack.c.l.b16 %v1319
      %v1337 = vunpack.c.l.b16 %v1323
      %v1338 = vunpack.c.l.b16 %v1327
      %v1339 = vpack.c.b16 %v1332, %v1331
      %v1340 = vpack.c.b16 %v1334, %v1333
      %v1341 = vpack.c.b16 %v1336, %v1335
      %v1342 = vpack.c.b16 %v1338, %v1337
      %v1345 = vunpack.c.l.b16 %v1329
      %v1346 = vunpack.c.l.b16 %v1330
      %v1347 = vpack.c.b16 %v1346, %v1345
      %v1349 = vsel %vm961, %v1339, 0
      %v1352 = vsel %vm961, %v1340, 0
      %v1355 = vsel %vm961, %v1341, 0
      %v1358 = vsel %vm961, %v1342, 0
      %v1361 = vsel %vm1183, %v1347, 0
      %1363 = vmatpush.bf16.msra.mxu0 0
      %1364 = vmatpush.bf16.msra.mxu0 0
      %1365 = vmatpush.bf16.msra.mxu0 0
      %1366 = vmatpush.bf16.msra.mxu0 0
      %1367 = vmatpush.bf16.msra.mxu0 0
      %1368 = vmatpush.bf16.msra.mxu0 0
      %1369 = vmatpush.bf16.msra.mxu0 0
      %1370 = vmatpush.bf16.msra.mxu0 %v1361
      %1371 = vmatmul.bf16.gmra.mxu0 %v1349
      %v1372 = vpop.f32.mrf.mxu0
      %v1373 = vadd.f32 0.0, %v1372
      %v1374 = vpop.f32.mrf.mxu0
      %v1375 = vadd.f32 0.0, %v1374
      %1376 = vmatmul.bf16.gmra.mxu0 %v1352
      %v1377 = vpop.f32.mrf.mxu0
      %v1378 = vadd.f32 0.0, %v1377
      %v1379 = vpop.f32.mrf.mxu0
      %v1380 = vadd.f32 0.0, %v1379
      %1381 = vmatmul.bf16.gmra.mxu0 %v1355
      %v1382 = vpop.f32.mrf.mxu0
      %v1383 = vadd.f32 0.0, %v1382
      %v1384 = vpop.f32.mrf.mxu0
      %v1385 = vadd.f32 0.0, %v1384
      %1386 = vmatmul.bf16.gmra.mxu0 %v1358
      %v1387 = vpop.f32.mrf.mxu0
      %v1388 = vadd.f32 0.0, %v1387
      %v1389 = vpop.f32.mrf.mxu0
      %v1390 = vadd.f32 0.0, %v1389
      %1391 = vdwg.mxu0
      %v1392 = vadd.f32 %v1266, %v1373
      %v1393 = vadd.f32 %v1268, %v1375
      %v1394 = vadd.f32 %v1271, %v1378
      %v1395 = vadd.f32 %v1273, %v1380
      %v1396 = vadd.f32 %v1276, %v1383
      %v1397 = vadd.f32 %v1278, %v1385
      %v1398 = vadd.f32 %v1281, %v1388
      %v1399 = vadd.f32 %v1283, %v1390
      %s1400 = scalar_lea.vmem %s6, 24
      %v1401 = vld [vmem:[%s1400] sm:$0xf]
      %v1402 = vld [vmem:[%s1400 + $0x4] sm:$0x3]
      %v1404 = vunpack.c.l.b16 %v1030
      %v1405 = vpack.c.b16 %v1226, %v1225
      %v1406 = vpack.c.b16 %v1228, %v1227
      %v1407 = vpack.c.b16 %v1230, %v1229
      %v1408 = vpack.c.b16 %v1404, %v1231
      %v1411 = vunpack.c.l.b16 %v1401
      %v1412 = vunpack.c.l.b16 %v1402
      %v1413 = vpack.c.b16 %v1412, %v1411
      %v1415 = vsel %vm961, %v1405, 0
      %v1418 = vsel %vm961, %v1406, 0
      %v1421 = vsel %vm961, %v1407, 0
      %v1424 = vsel %vm961, %v1408, 0
      %v1427 = vsel %vm1183, %v1413, 0
      %1429 = vmatpush.bf16.msra.mxu0 0
      %1430 = vmatpush.bf16.msra.mxu0 0
      %1431 = vmatpush.bf16.msra.mxu0 0
      %1432 = vmatpush.bf16.msra.mxu0 0
      %1433 = vmatpush.bf16.msra.mxu0 0
      %1434 = vmatpush.bf16.msra.mxu0 0
      %1435 = vmatpush.bf16.msra.mxu0 0
      %1436 = vmatpush.bf16.msra.mxu0 %v1427
      %1437 = vmatmul.bf16.gmra.mxu0 %v1415
      %v1438 = vpop.f32.mrf.mxu0
      %v1439 = vadd.f32 0.0, %v1438
      %v1440 = vpop.f32.mrf.mxu0
      %v1441 = vadd.f32 0.0, %v1440
      %1442 = vmatmul.bf16.gmra.mxu0 %v1418
      %v1443 = vpop.f32.mrf.mxu0
      %v1444 = vadd.f32 0.0, %v1443
      %v1445 = vpop.f32.mrf.mxu0
      %v1446 = vadd.f32 0.0, %v1445
      %1447 = vmatmul.bf16.gmra.mxu0 %v1421
      %v1448 = vpop.f32.mrf.mxu0
      %v1449 = vadd.f32 0.0, %v1448
      %v1450 = vpop.f32.mrf.mxu0
      %v1451 = vadd.f32 0.0, %v1450
      %1452 = vmatmul.bf16.gmra.mxu0 %v1424
      %v1453 = vpop.f32.mrf.mxu0
      %v1454 = vadd.f32 0.0, %v1453
      %v1455 = vpop.f32.mrf.mxu0
      %v1456 = vadd.f32 0.0, %v1455
      %1457 = vdwg.mxu0
      %v1458 = vadd.f32 %v1392, %v1439
      %v1459 = vadd.f32 %v1393, %v1441
      %v1460 = vadd.f32 %v1394, %v1444
      %v1461 = vadd.f32 %v1395, %v1446
      %v1462 = vadd.f32 %v1396, %v1449
      %v1463 = vadd.f32 %v1397, %v1451
      %v1464 = vadd.f32 %v1398, %v1454
      %v1465 = vadd.f32 %v1399, %v1456
      %v1467 = vshrl.u32 %v1030, 16
      %v1469 = vrot.slane %v1467, 4
      %v1470 = vshll.u32 %v1030, 16
      %v1472 = vrot.slane %v1470, 5
      %v1473 = vor.u32 %v1469, %v1472
      %v1474 = vrot.slane %v1473, 4
      %v1476 = vshll.u32 %v1031, 16
      %v1478 = vrot.slane %v1476, 5
      %v1479 = vsel %vm1038, %v1474, %v1478
      %s1480 = scalar_lea.vmem %s6, 32
      %v1481 = vld [vmem:[%s1480] sm:$0xf]
      %v1482 = vld [vmem:[%s1480 + $0x4] sm:$0x3]
      %v1483 = vunpack.c.l.b16 %v1479
      %v1484 = vpack.c.b16 %v1156, %v1155
      %v1485 = vpack.c.b16 %v1158, %v1157
      %v1486 = vpack.c.b16 %v1160, %v1159
      %v1487 = vpack.c.b16 %v1483, %v1161
      %v1490 = vunpack.c.l.b16 %v1481
      %v1491 = vunpack.c.l.b16 %v1482
      %v1492 = vpack.c.b16 %v1491, %v1490
      %v1494 = vsel %vm961, %v1484, 0
      %v1497 = vsel %vm961, %v1485, 0
      %v1500 = vsel %vm961, %v1486, 0
      %v1503 = vsel %vm961, %v1487, 0
      %v1506 = vsel %vm1183, %v1492, 0
      %1508 = vmatpush.bf16.msra.mxu0 0
      %1509 = vmatpush.bf16.msra.mxu0 0
      %1510 = vmatpush.bf16.msra.mxu0 0
      %1511 = vmatpush.bf16.msra.mxu0 0
      %1512 = vmatpush.bf16.msra.mxu0 0
      %1513 = vmatpush.bf16.msra.mxu0 0
      %1514 = vmatpush.bf16.msra.mxu0 0
      %1515 = vmatpush.bf16.msra.mxu0 %v1506
      %1516 = vmatmul.bf16.gmra.mxu0 %v1494
      %v1517 = vpop.f32.mrf.mxu0
      %v1518 = vadd.f32 0.0, %v1517
      %v1519 = vpop.f32.mrf.mxu0
      %v1520 = vadd.f32 0.0, %v1519
      %1521 = vmatmul.bf16.gmra.mxu0 %v1497
      %v1522 = vpop.f32.mrf.mxu0
      %v1523 = vadd.f32 0.0, %v1522
      %v1524 = vpop.f32.mrf.mxu0
      %v1525 = vadd.f32 0.0, %v1524
      %1526 = vmatmul.bf16.gmra.mxu0 %v1500
      %v1527 = vpop.f32.mrf.mxu0
      %v1528 = vadd.f32 0.0, %v1527
      %v1529 = vpop.f32.mrf.mxu0
      %v1530 = vadd.f32 0.0, %v1529
      %1531 = vmatmul.bf16.gmra.mxu0 %v1503
      %v1532 = vpop.f32.mrf.mxu0
      %v1533 = vadd.f32 0.0, %v1532
      %v1534 = vpop.f32.mrf.mxu0
      %v1535 = vadd.f32 0.0, %v1534
      %1536 = vdwg.mxu0
      %v1537 = vadd.f32 %v1458, %v1518
      %v1538 = vadd.f32 %v1459, %v1520
      %v1539 = vadd.f32 %v1460, %v1523
      %v1540 = vadd.f32 %v1461, %v1525
      %v1541 = vadd.f32 %v1462, %v1528
      %v1542 = vadd.f32 %v1463, %v1530
      %v1543 = vadd.f32 %v1464, %v1533
      %v1544 = vadd.f32 %v1465, %v1535
      %v1546 = vrot.slane %v1030, 5
      %v1547 = vrot.slane %v1546, 4
      %v1548 = vrot.slane %v1031, 5
      %v1549 = vsel %vm1295, %v1547, %v1548
      %s1550 = scalar_lea.vmem %s6, 40
      %v1551 = vld [vmem:[%s1550] sm:$0xf]
      %v1552 = vld [vmem:[%s1550 + $0x4] sm:$0x3]
      %v1553 = vunpack.c.l.b16 %v1549
      %v1554 = vpack.c.b16 %v1333, %v1332
      %v1555 = vpack.c.b16 %v1335, %v1334
      %v1556 = vpack.c.b16 %v1337, %v1336
      %v1557 = vpack.c.b16 %v1553, %v1338
      %v1560 = vunpack.c.l.b16 %v1551
      %v1561 = vunpack.c.l.b16 %v1552
      %v1562 = vpack.c.b16 %v1561, %v1560
      %v1564 = vsel %vm961, %v1554, 0
      %v1567 = vsel %vm961, %v1555, 0
      %v1570 = vsel %vm961, %v1556, 0
      %v1573 = vsel %vm961, %v1557, 0
      %v1576 = vsel %vm1183, %v1562, 0
      %1578 = vmatpush.bf16.msra.mxu0 0
      %1579 = vmatpush.bf16.msra.mxu0 0
      %1580 = vmatpush.bf16.msra.mxu0 0
      %1581 = vmatpush.bf16.msra.mxu0 0
      %1582 = vmatpush.bf16.msra.mxu0 0
      %1583 = vmatpush.bf16.msra.mxu0 0
      %1584 = vmatpush.bf16.msra.mxu0 0
      %1585 = vmatpush.bf16.msra.mxu0 %v1576
      %1586 = vmatmul.bf16.gmra.mxu0 %v1564
      %v1587 = vpop.f32.mrf.mxu0
      %v1588 = vadd.f32 0.0, %v1587
      %v1589 = vpop.f32.mrf.mxu0
      %v1590 = vadd.f32 0.0, %v1589
      %1591 = vmatmul.bf16.gmra.mxu0 %v1567
      %v1592 = vpop.f32.mrf.mxu0
      %v1593 = vadd.f32 0.0, %v1592
      %v1594 = vpop.f32.mrf.mxu0
      %v1595 = vadd.f32 0.0, %v1594
      %1596 = vmatmul.bf16.gmra.mxu0 %v1570
      %v1597 = vpop.f32.mrf.mxu0
      %v1598 = vadd.f32 0.0, %v1597
      %v1599 = vpop.f32.mrf.mxu0
      %v1600 = vadd.f32 0.0, %v1599
      %1601 = vmatmul.bf16.gmra.mxu0 %v1573
      %v1602 = vpop.f32.mrf.mxu0
      %v1603 = vadd.f32 0.0, %v1602
      %v1604 = vpop.f32.mrf.mxu0
      %v1605 = vadd.f32 0.0, %v1604
      %1606 = vdwg.mxu0
      %v1607 = vadd.f32 %v1537, %v1588
      %v1608 = vadd.f32 %v1538, %v1590
      %v1609 = vadd.f32 %v1539, %v1593
      %v1610 = vadd.f32 %v1540, %v1595
      %v1611 = vadd.f32 %v1541, %v1598
      %v1612 = vadd.f32 %v1542, %v1600
      %v1613 = vadd.f32 %v1543, %v1603
      %v1614 = vadd.f32 %v1544, %v1605
      %s1615 = scalar_lea.vmem %s6, 48
      %v1616 = vld [vmem:[%s1615] sm:$0xf]
      %v1617 = vld [vmem:[%s1615 + $0x4] sm:$0x3]
      %v1619 = vunpack.c.l.b16 %v1032
      %v1620 = vpack.c.b16 %v1619, %v1404
      %v1623 = vunpack.c.l.b16 %v1616
      %v1624 = vunpack.c.l.b16 %v1617
      %v1625 = vpack.c.b16 %v1624, %v1623
      %v1627 = vsel %vm961, %v1620, 0
      %v1630 = vsel %vm1183, %v1625, 0
      %1632 = vmatpush.bf16.msra.mxu0 0
      %1633 = vmatpush.bf16.msra.mxu0 0
      %1634 = vmatpush.bf16.msra.mxu0 0
      %1635 = vmatpush.bf16.msra.mxu0 0
      %1636 = vmatpush.bf16.msra.mxu0 0
      %1637 = vmatpush.bf16.msra.mxu0 0
      %1638 = vmatpush.bf16.msra.mxu0 0
      %1639 = vmatpush.bf16.msra.mxu0 %v1630
      %1640 = vmatmul.bf16.gmra.mxu0 %v1245
      %v1641 = vpop.f32.mrf.mxu0
      %v1642 = vadd.f32 0.0, %v1641
      %v1643 = vpop.f32.mrf.mxu0
      %v1644 = vadd.f32 0.0, %v1643
      %1645 = vmatmul.bf16.gmra.mxu0 %v1248
      %v1646 = vpop.f32.mrf.mxu0
      %v1647 = vadd.f32 0.0, %v1646
      %v1648 = vpop.f32.mrf.mxu0
      %v1649 = vadd.f32 0.0, %v1648
      %1650 = vmatmul.bf16.gmra.mxu0 %v1251
      %v1651 = vpop.f32.mrf.mxu0
      %v1652 = vadd.f32 0.0, %v1651
      %v1653 = vpop.f32.mrf.mxu0
      %v1654 = vadd.f32 0.0, %v1653
      %1655 = vmatmul.bf16.gmra.mxu0 %v1627
      %v1656 = vpop.f32.mrf.mxu0
      %v1657 = vadd.f32 0.0, %v1656
      %v1658 = vpop.f32.mrf.mxu0
      %v1659 = vadd.f32 0.0, %v1658
      %1660 = vdwg.mxu0
      %v1661 = vadd.f32 %v1607, %v1642
      %v1662 = vadd.f32 %v1608, %v1644
      %v1663 = vadd.f32 %v1609, %v1647
      %v1664 = vadd.f32 %v1610, %v1649
      %v1665 = vadd.f32 %v1611, %v1652
      %v1666 = vadd.f32 %v1612, %v1654
      %v1667 = vadd.f32 %v1613, %v1657
      %v1668 = vadd.f32 %v1614, %v1659
      %v1670 = vshrl.u32 %v1032, 16
      %v1672 = vrot.slane %v1670, 4
      %v1673 = vshll.u32 %v1032, 16
      %v1675 = vrot.slane %v1673, 5
      %v1676 = vor.u32 %v1672, %v1675
      %v1677 = vrot.slane %v1676, 4
      %v1679 = vshll.u32 %v1033, 16
      %v1681 = vrot.slane %v1679, 5
      %v1682 = vsel %vm1038, %v1677, %v1681
      %s1683 = scalar_lea.vmem %s6, 56
      %v1684 = vld [vmem:[%s1683] sm:$0xf]
      %v1685 = vld [vmem:[%s1683 + $0x4] sm:$0x3]
      %v1686 = vunpack.c.l.b16 %v1682
      %v1687 = vpack.c.b16 %v1686, %v1483
      %v1690 = vunpack.c.l.b16 %v1684
      %v1691 = vunpack.c.l.b16 %v1685
      %v1692 = vpack.c.b16 %v1691, %v1690
      %v1694 = vsel %vm961, %v1687, 0
      %v1697 = vsel %vm1183, %v1692, 0
      %1699 = vmatpush.bf16.msra.mxu0 0
      %1700 = vmatpush.bf16.msra.mxu0 0
      %1701 = vmatpush.bf16.msra.mxu0 0
      %1702 = vmatpush.bf16.msra.mxu0 0
      %1703 = vmatpush.bf16.msra.mxu0 0
      %1704 = vmatpush.bf16.msra.mxu0 0
      %1705 = vmatpush.bf16.msra.mxu0 0
      %1706 = vmatpush.bf16.msra.mxu0 %v1697
      %1707 = vmatmul.bf16.gmra.mxu0 %v1175
      %v1708 = vpop.f32.mrf.mxu0
      %v1709 = vadd.f32 0.0, %v1708
      %v1710 = vpop.f32.mrf.mxu0
      %v1711 = vadd.f32 0.0, %v1710
      %1712 = vmatmul.bf16.gmra.mxu0 %v1178
      %v1713 = vpop.f32.mrf.mxu0
      %v1714 = vadd.f32 0.0, %v1713
      %v1715 = vpop.f32.mrf.mxu0
      %v1716 = vadd.f32 0.0, %v1715
      %1717 = vmatmul.bf16.gmra.mxu0 %v1181
      %v1718 = vpop.f32.mrf.mxu0
      %v1719 = vadd.f32 0.0, %v1718
      %v1720 = vpop.f32.mrf.mxu0
      %v1721 = vadd.f32 0.0, %v1720
      %1722 = vmatmul.bf16.gmra.mxu0 %v1694
      %v1723 = vpop.f32.mrf.mxu0
      %v1724 = vadd.f32 0.0, %v1723
      %v1725 = vpop.f32.mrf.mxu0
      %v1726 = vadd.f32 0.0, %v1725
      %1727 = vdwg.mxu0
      %v1728 = vadd.f32 %v1661, %v1709
      %v1729 = vadd.f32 %v1662, %v1711
      %v1730 = vadd.f32 %v1663, %v1714
      %v1731 = vadd.f32 %v1664, %v1716
      %v1732 = vadd.f32 %v1665, %v1719
      %v1733 = vadd.f32 %v1666, %v1721
      %v1734 = vadd.f32 %v1667, %v1724
      %v1735 = vadd.f32 %v1668, %v1726
      %v1737 = vrot.slane %v1032, 5
      %v1738 = vrot.slane %v1737, 4
      %v1739 = vrot.slane %v1033, 5
      %v1740 = vsel %vm1295, %v1738, %v1739
      %s1741 = scalar_lea.vmem %s6, 64
      %v1742 = vld [vmem:[%s1741] sm:$0xf]
      %v1743 = vld [vmem:[%s1741 + $0x4] sm:$0x3]
      %v1744 = vunpack.c.l.b16 %v1740
      %v1745 = vpack.c.b16 %v1744, %v1553
      %v1748 = vunpack.c.l.b16 %v1742
      %v1749 = vunpack.c.l.b16 %v1743
      %v1750 = vpack.c.b16 %v1749, %v1748
      %v1752 = vsel %vm961, %v1745, 0
      %v1755 = vsel %vm1183, %v1750, 0
      %1757 = vmatpush.bf16.msra.mxu0 0
      %1758 = vmatpush.bf16.msra.mxu0 0
      %1759 = vmatpush.bf16.msra.mxu0 0
      %1760 = vmatpush.bf16.msra.mxu0 0
      %1761 = vmatpush.bf16.msra.mxu0 0
      %1762 = vmatpush.bf16.msra.mxu0 0
      %1763 = vmatpush.bf16.msra.mxu0 0
      %1764 = vmatpush.bf16.msra.mxu0 %v1755
      %1765 = vmatmul.bf16.gmra.mxu0 %v1352
      %v1766 = vpop.f32.mrf.mxu0
      %v1767 = vadd.f32 0.0, %v1766
      %v1768 = vpop.f32.mrf.mxu0
      %v1769 = vadd.f32 0.0, %v1768
      %1770 = vmatmul.bf16.gmra.mxu0 %v1355
      %v1771 = vpop.f32.mrf.mxu0
      %v1772 = vadd.f32 0.0, %v1771
      %v1773 = vpop.f32.mrf.mxu0
      %v1774 = vadd.f32 0.0, %v1773
      %1775 = vmatmul.bf16.gmra.mxu0 %v1358
      %v1776 = vpop.f32.mrf.mxu0
      %v1777 = vadd.f32 0.0, %v1776
      %v1778 = vpop.f32.mrf.mxu0
      %v1779 = vadd.f32 0.0, %v1778
      %1780 = vmatmul.bf16.gmra.mxu0 %v1752
      %v1781 = vpop.f32.mrf.mxu0
      %v1782 = vadd.f32 0.0, %v1781
      %v1783 = vpop.f32.mrf.mxu0
      %v1784 = vadd.f32 0.0, %v1783
      %1785 = vdwg.mxu0
      %v1786 = vadd.f32 %v1728, %v1767
      %v1787 = vadd.f32 %v1729, %v1769
      %v1788 = vadd.f32 %v1730, %v1772
      %v1789 = vadd.f32 %v1731, %v1774
      %v1790 = vadd.f32 %v1732, %v1777
      %v1791 = vadd.f32 %v1733, %v1779
      %v1792 = vadd.f32 %v1734, %v1782
      %v1793 = vadd.f32 %v1735, %v1784
      %v1794 = vld [vmem:[%s7] sm:$0x1]
      %v1796 = vperm.slane %v1794, 0
      %v1798 = vmul.f32 %v1786, %v1796
      %v1799 = vmul.f32 %v1787, %v1796
      %v1800 = vmul.f32 %v1788, %v1796
      %v1801 = vmul.f32 %v1789, %v1796
      %v1802 = vmul.f32 %v1790, %v1796
      %v1803 = vmul.f32 %v1791, %v1796
      %v1804 = vmul.f32 %v1792, %v1796
      %v1805 = vmul.f32 %v1793, %v1796
      %v1806 = vld [vmem:[%s8] sm:$0x1]
      %v1808 = vperm.slane %v1806, 0
      %v1810 = vadd.f32 %v1798, %v1808
      %v1811 = vadd.f32 %v1799, %v1808
      %v1812 = vadd.f32 %v1800, %v1808
      %v1813 = vadd.f32 %v1801, %v1808
      %v1814 = vadd.f32 %v1802, %v1808
      %v1815 = vadd.f32 %v1803, %v1808
      %v1816 = vadd.f32 %v1804, %v1808
      %v1817 = vadd.f32 %v1805, %v1808
      %v1818 = vmax.f32 %v1810, 0.0
      %v1819 = vmax.f32 %v1811, 0.0
      %v1820 = vmax.f32 %v1812, 0.0
      %v1821 = vmax.f32 %v1813, 0.0
      %v1822 = vmax.f32 %v1814, 0.0
      %v1823 = vmax.f32 %v1815, 0.0
      %v1824 = vmax.f32 %v1816, 0.0
      %v1825 = vmax.f32 %v1817, 0.0
      %v1826 = vpack.c.bf16 %v1819, %v1818
      %v1827 = vpack.c.bf16 %v1821, %v1820
      %v1828 = vpack.c.bf16 %v1823, %v1822
      %v1829 = vpack.c.bf16 %v1825, %v1824
      %v1830 = vld [vmem:[%s9] sm:$0x3]
      %v1832 = vsel %vm943, %v1826, 0
      %v1835 = vsel %vm943, %v1827, 0
      %v1838 = vsel %vm943, %v1828, 0
      %v1841 = vsel %vm943, %v1829, 0
      %vm1843 = vcmask 1041408
      %v1845 = vsel %vm1843, %v1830, 0
      %1847 = vmatpush.bf16.msra.mxu0 0
      %1848 = vmatpush.bf16.msra.mxu0 0
      %1849 = vmatpush.bf16.msra.mxu0 0
      %1850 = vmatpush.bf16.msra.mxu0 0
      %1851 = vmatpush.bf16.msra.mxu0 0
      %1852 = vmatpush.bf16.msra.mxu0 0
      %1853 = vmatpush.bf16.msra.mxu0 0
      %1854 = vmatpush.bf16.msra.mxu0 %v1845
      %1855 = vmatmul.bf16.gmra.mxu0 %v1832
      %v1856 = vpop.f32.mrf.mxu0
      %v1857 = vadd.f32 0.0, %v1856
      %v1858 = vpop.f32.mrf.mxu0
      %v1859 = vadd.f32 0.0, %v1858
      %1860 = vmatmul.bf16.gmra.mxu0 %v1835
      %v1861 = vpop.f32.mrf.mxu0
      %v1862 = vadd.f32 0.0, %v1861
      %v1863 = vpop.f32.mrf.mxu0
      %v1864 = vadd.f32 0.0, %v1863
      %1865 = vmatmul.bf16.gmra.mxu0 %v1838
      %v1866 = vpop.f32.mrf.mxu0
      %v1867 = vadd.f32 0.0, %v1866
      %v1868 = vpop.f32.mrf.mxu0
      %v1869 = vadd.f32 0.0, %v1868
      %1870 = vmatmul.bf16.gmra.mxu0 %v1841
      %v1871 = vpop.f32.mrf.mxu0
      %v1872 = vadd.f32 0.0, %v1871
      %v1873 = vpop.f32.mrf.mxu0
      %v1874 = vadd.f32 0.0, %v1873
      %1875 = vdwg.mxu0
      %v1876 = vld [vmem:[%s535] sm:$0xf]
      %v1877 = vld [vmem:[%s535 + $0x4] sm:$0xf]
      %v1878 = vld [vmem:[%s535 + $0x8] sm:$0xf]
      %v1879 = vld [vmem:[%s535 + $0xc] sm:$0xf]
      %v1880 = vld [vmem:[%s535 + $0x10] sm:$0xf]
      %v1881 = vld [vmem:[%s535 + $0x14] sm:$0xf]
      %v1882 = vld [vmem:[%s535 + $0x18] sm:$0xf]
      %v1883 = vld [vmem:[%s535 + $0x1c] sm:$0xf]
      %v1884 = vunpack.c.l.bf16 %v1876
      %v1885 = vunpack.c.l.bf16 %v1877
      %v1886 = vunpack.c.l.bf16 %v1878
      %v1887 = vunpack.c.l.bf16 %v1879
      %v1888 = vunpack.c.l.bf16 %v1880
      %v1889 = vunpack.c.l.bf16 %v1881
      %v1890 = vunpack.c.l.bf16 %v1882
      %v1891 = vunpack.c.l.bf16 %v1883
      %v1892 = vld [vmem:[%s10] sm:$0x1]
      %v1894 = vperm.slane %v1892, 0
      %v1896 = vmul.f32 %v1857, %v1894
      %v1897 = vmul.f32 %v1859, %v1894
      %v1898 = vmul.f32 %v1862, %v1894
      %v1899 = vmul.f32 %v1864, %v1894
      %v1900 = vmul.f32 %v1867, %v1894
      %v1901 = vmul.f32 %v1869, %v1894
      %v1902 = vmul.f32 %v1872, %v1894
      %v1903 = vmul.f32 %v1874, %v1894
      %v1904 = vld [vmem:[%s11] sm:$0x1]
      %v1906 = vperm.slane %v1904, 0
      %v1908 = vadd.f32 %v1896, %v1906
      %v1909 = vadd.f32 %v1897, %v1906
      %v1910 = vadd.f32 %v1898, %v1906
      %v1911 = vadd.f32 %v1899, %v1906
      %v1912 = vadd.f32 %v1900, %v1906
      %v1913 = vadd.f32 %v1901, %v1906
      %v1914 = vadd.f32 %v1902, %v1906
      %v1915 = vadd.f32 %v1903, %v1906
      %v1916 = vadd.f32 %v1908, %v1884
      %v1917 = vadd.f32 %v1909, %v1885
      %v1918 = vadd.f32 %v1910, %v1886
      %v1919 = vadd.f32 %v1911, %v1887
      %v1920 = vadd.f32 %v1912, %v1888
      %v1921 = vadd.f32 %v1913, %v1889
      %v1922 = vadd.f32 %v1914, %v1890
      %v1923 = vadd.f32 %v1915, %v1891
      %v1924 = vmax.f32 %v1916, 0.0
      %v1925 = vmax.f32 %v1917, 0.0
      %v1926 = vmax.f32 %v1918, 0.0
      %v1927 = vmax.f32 %v1919, 0.0
      %v1928 = vmax.f32 %v1920, 0.0
      %v1929 = vmax.f32 %v1921, 0.0
      %v1930 = vmax.f32 %v1922, 0.0
      %v1931 = vmax.f32 %v1923, 0.0
      %v1932 = vpack.c.bf16 %v1924, %v1924
      %v1933 = vpack.c.bf16 %v1925, %v1925
      %v1934 = vpack.c.bf16 %v1926, %v1926
      %v1935 = vpack.c.bf16 %v1927, %v1927
      %v1936 = vpack.c.bf16 %v1928, %v1928
      %v1937 = vpack.c.bf16 %v1929, %v1929
      %v1938 = vpack.c.bf16 %v1930, %v1930
      %v1939 = vpack.c.bf16 %v1931, %v1931
      %vm1940 = vcmask 125952
      %1941 = vst.msk [vmem:[%s559] sm:$0xf] %vm1940, %v1932
      %1942 = vst.msk [vmem:[%s559 + $0x4] sm:$0xf] %vm1940, %v1933
      %1943 = vst.msk [vmem:[%s559 + $0x8] sm:$0xf] %vm1940, %v1934
      %1944 = vst.msk [vmem:[%s559 + $0xc] sm:$0xf] %vm1940, %v1935
      %1945 = vst.msk [vmem:[%s559 + $0x10] sm:$0xf] %vm1940, %v1936
      %1946 = vst.msk [vmem:[%s559 + $0x14] sm:$0xf] %vm1940, %v1937
      %1947 = vst.msk [vmem:[%s559 + $0x18] sm:$0xf] %vm1940, %v1938
      %1948 = vst.msk [vmem:[%s559 + $0x1c] sm:$0xf] %vm1940, %v1939
      %p1949 = scmp.lt.s32.totalorder %s27, 1
      %s1950 = scalar_select %p1949, %s27, 1
      %p1951 = scmp.lt.s32.totalorder %s28, 3
      %s1952 = scalar_select %p1951, %s28, 3
      %s1953 = smul.addr %s1952, 8
      %s1954 = smul.addr %s1950, 32
      %s1955 = sadd.s32 %s1953, %s1954
      %s1956 = smul.addr %s1955, 4
      %s1957 = scalar_lea.vmem %s12, %s1956
      // Predicated region
      $region69: #{bottleneck_forward.1} parent=67 // pred_check
        %p1958 = pneg %p340
      $region70: #{bottleneck_forward.1} parent=67 // pred_check_branch
        %1960 = sbr.rel (%p1958) target = $region72
      $region71: #{bottleneck_forward.1} parent=67 // pred_region
        _
      $region72: #{bottleneck_forward.1} parent=67 // pred_fallthru
        _
    $region68: #{bottleneck_forward.1} parent=5 // pred_fallthru
      _
    %p1961 = scmp.le.s32.totalorder 2, %s18
    // Predicated region
    $region73: #{bottleneck_forward.1} parent=5 // pred_check
      %p1962 = pneg %p1961
    $region74: #{bottleneck_forward.1} parent=5 // pred_check_branch
      %1964 = sbr.rel (%p1962) target = $region76
    $region75: #{bottleneck_forward.1} parent=5 // pred_region
      %s1965 = ssub.s32 %s18, 2
      // Predicated region
      $region77: #{bottleneck_forward.1} parent=75 // pred_check
        %p1966 = pneg %p346
      $region78: #{bottleneck_forward.1} parent=75 // pred_check_branch
        %1968 = sbr.rel (%p1966) target = $region80
      $region79: #{bottleneck_forward.1} parent=75 // pred_region
        %p1969 = scmp.lt.s32.totalorder %s29, 1
        %s1970 = scalar_select %p1969, %s29, 1
        %p1971 = scmp.lt.s32.totalorder %s30, 3
        %s1972 = scalar_select %p1971, %s30, 3
        %s1973 = smul.addr %s1972, 8
        %s1974 = smul.addr %s1970, 32
        %s1975 = sadd.s32 %s1973, %s1974
        %s1976 = smul.addr %s1975, 4
        %s1977 = scalar_lea.vmem %s12, %s1976
      $region80: #{bottleneck_forward.1} parent=75 // pred_fallthru
        _
    $region76: #{bottleneck_forward.1} parent=5 // pred_fallthru
      _
  $region6: #{bottleneck_forward.1} parent=0 // loop_footer
    %s22 = sadd.s32 1, %s18
  $region7: #{bottleneck_forward.1} parent=0 // loop_footer_branch
    %17 = sbr.rel target = $region3
  $region8: #{bottleneck_forward.1} parent=0 // loop_exit
    _

</llo_original>
